<compile_context>
chip_gen: v7x
topology: tpu7x:2x2x1
jax: 0.10.0
libtpu: 0.0.40
codegen_flags: <defaults>
</compile_context>

<pallas_src>
import jax
import jax.numpy as jnp
import numpy as np
from jax.experimental import pallas as pl
from jax.experimental.pallas import tpu as pltpu

NEG_SLOPE = 0.01   # torch.nn.LeakyReLU default
SUB_BLOCK = 64     # max feature width of any layer in this MLP


def _leaky_relu(h):
    return jnp.where(h > 0, h, NEG_SLOPE * h)


# --------------------------------------------------------------------------
# Kernel: one batch tile through all 8 layers (lane-packed activations).
#   x_ref     : (TB, P*in_dim)      bf16
#   w1_ref    : (P*in_dim, LANE)    bf16, block-diagonal
#   w_all_ref : (7, LANE, LANE)     bf16, block-diagonal per layer
#   b_all_ref : (8, 1, LANE)        f32, bias duplicated per lane block
#   out_ref   : (TB, LANE)          bf16
# --------------------------------------------------------------------------
def _mlp_ard_kernel(x_ref, w1_ref, w_all_ref, b_all_ref, out_ref):
    n_hidden = w_all_ref.shape[0]

    # Layer 1 (GaussianPriorLayer, weights pre-sampled in the wrapper).
    h = jnp.dot(x_ref[...], w1_ref[...], preferred_element_type=jnp.float32)
    h = _leaky_relu(h + b_all_ref[0])

    # Hidden + output layers (unrolled); bf16 MXU operands, f32 accumulate.
    for i in range(n_hidden):
        h = jnp.dot(h.astype(jnp.bfloat16), w_all_ref[i],
                    preferred_element_type=jnp.float32)
        h = h + b_all_ref[i + 1]
        if i < n_hidden - 1:
            h = _leaky_relu(h)

    out_ref[...] = h.astype(out_ref.dtype)


# --------------------------------------------------------------------------
# Packing helpers
# --------------------------------------------------------------------------
def _block_diag_weight(w, pack, row_block, col_block):
    """Place `w` (din, dout) on the diagonal of a (pack*row_block, pack*col_block)."""
    din, dout = w.shape
    out = jnp.zeros((pack * row_block, pack * col_block), jnp.float32)
    for p in range(pack):
        out = out.at[p * row_block:p * row_block + din,
                     p * col_block:p * col_block + dout].set(w)
    return out.astype(jnp.bfloat16)


def _packed_bias(b, pack, col_block):
    """Duplicate bias into every lane block -> (1, pack*col_block) f32."""
    dout = b.shape[0]
    out = jnp.zeros((pack, col_block), jnp.float32).at[:, :dout].set(b)
    return out.reshape(1, pack * col_block)


def _default_pack_factor():
    """2 sub-tiles on 128-wide MXUs (v5e and older), 4 on 256-wide (v6e/v7x)."""
    try:
        kind = jax.devices()[0].device_kind.lower()
        if ("v6" in kind) or ("v7" in kind):
            return 4
    except Exception:
        pass
    return 2


# --------------------------------------------------------------------------
# Wrapper
# --------------------------------------------------------------------------
def mlp_with_ard_forward(x, params, *, tile_b=1024, pack=None):
    """Forward pass of MLPwithARD as one fused Pallas kernel.

    params: dict with w1_mean (in,64), b1 (64,), alpha (in,), noise (in,64),
            ws: list of (din,dout) weights, bs: list of (dout,) biases.
    """
    B, in_dim = x.shape
    out_dim = params["ws"][-1].shape[1]
    assert out_dim <= SUB_BLOCK, "lane-packing assumes all layer widths <= 64"

    if pack is None:
        pack = _default_pack_factor()
    P = pack
    LANE = P * SUB_BLOCK                     # 128 (v5e) or 256 (v6e/v7x)

    # --- GaussianPriorLayer weight sampling, hoisted out of the kernel ---
    std = jnp.sqrt(params["alpha"]).reshape(-1, 1)           # (in, 1)
    w1 = params["w1_mean"] + std * params["noise"]           # (in, 64)

    # --- block-diagonal, lane-packed weights / biases ---
    w1_p = _block_diag_weight(w1, P, in_dim, SUB_BLOCK)       # (P*in, LANE) bf16
    w_all = jnp.stack([_block_diag_weight(w, P, SUB_BLOCK, SUB_BLOCK)
                       for w in params["ws"]])                # (7, LANE, LANE) bf16
    b_all = jnp.stack([_packed_bias(b, P, SUB_BLOCK)
                       for b in [params["b1"]] + list(params["bs"])])  # (8,1,LANE) f32

    # --- batch tiling: P logical rows share one physical (lane-packed) row ---
    B_phys = pl.cdiv(B, P)
    TB = min(tile_b, max(8, pl.cdiv(B_phys, 2)))   # >= 2 grid steps (megacore)
    TB = ((TB + 7) // 8) * 8                       # sublane-aligned tile
    n_tiles = pl.cdiv(B_phys, TB)
    B_phys_p = n_tiles * TB
    Bp = P * B_phys_p

    x_pad = jnp.pad(x, ((0, Bp - B), (0, 0))).astype(jnp.bfloat16)
    # sub-tile p (logical rows [p*B_phys_p, (p+1)*B_phys_p)) -> lanes [p*in, (p+1)*in)
    x_packed = (x_pad.reshape(P, B_phys_p, in_dim)
                .transpose(1, 0, 2)
                .reshape(B_phys_p, P * in_dim))

    out_packed = pl.pallas_call(
        _mlp_ard_kernel,
        out_shape=jax.ShapeDtypeStruct((B_phys_p, LANE), jnp.bfloat16),
        grid=(n_tiles,),
        in_specs=[
            pl.BlockSpec((TB, P * in_dim), lambda i: (i, 0)),      # x tile
            pl.BlockSpec(w1_p.shape, lambda i: (0, 0)),            # VMEM-resident
            pl.BlockSpec(w_all.shape, lambda i: (0, 0, 0)),        # VMEM-resident
            pl.BlockSpec(b_all.shape, lambda i: (0, 0, 0)),        # VMEM-resident
        ],
        out_specs=pl.BlockSpec((TB, LANE), lambda i: (i, 0)),
        compiler_params=pltpu.CompilerParams(
            dimension_semantics=("parallel",)),
    )(x_packed, w1_p, w_all, b_all)

    # --- de-interleave the P lane blocks back into the batch dimension ---
    out = (out_packed.reshape(B_phys_p, P, SUB_BLOCK)[:, :, :out_dim]
           .transpose(1, 0, 2)
           .reshape(Bp, out_dim))
    return out[:B]


# --------------------------------------------------------------------------
# Pure-JAX references
# --------------------------------------------------------------------------
def reference_forward_f32(x, params):
    """Exact f32 forward, mirroring the PyTorch module semantics."""
    std = jnp.sqrt(params["alpha"]).reshape(-1, 1)
    w1 = params["w1_mean"] + std * params["noise"]
    ws = [w1] + list(params["ws"])
    bs = [params["b1"]] + list(params["bs"])
    h = x
    n = len(ws)
    for i, (w, b) in enumerate(zip(ws, bs)):
        h = h @ w + b
        if i < n - 1:
            h = _leaky_relu(h)
    return h


def reference_forward_bf16(x, params):
    """Mirrors the kernel's precision: bf16 matmul operands, f32 accumulate."""
    std = jnp.sqrt(params["alpha"]).reshape(-1, 1)
    w1 = params["w1_mean"] + std * params["noise"]
    ws = [w1] + list(params["ws"])
    bs = [params["b1"]] + list(params["bs"])
    h = x.astype(jnp.float32)
    n = len(ws)
    for i, (w, b) in enumerate(zip(ws, bs)):
        h = jnp.dot(h.astype(jnp.bfloat16), w.astype(jnp.bfloat16),
                    preferred_element_type=jnp.float32) + b
        if i < n - 1:
            h = _leaky_relu(h)
    return h


# --------------------------------------------------------------------------
# Parameter construction (shapes match MLPwithARD.__init__)
# --------------------------------------------------------------------------
def make_params(key, input_size, output_size):
    out_dims = [64, 64, 32, 32, 32, 16, output_size]
    in_dims = [64, 64, 64, 32, 32, 32, 16]
    keys = jax.random.split(key, 2 * len(out_dims) + 2)
    ki = iter(keys)

    # GaussianPriorLayer(input_size, 64, alpha_list)
    w1_mean = jnp.zeros((input_size, 64), jnp.float32)        # torch.zeros
    b1 = jnp.zeros((64,), jnp.float32)                        # torch.zeros
    alpha = jax.random.uniform(next(ki), (input_size,), jnp.float32,
                               minval=0.1, maxval=1.0)        # positive alphas
    # torch.randn_like weight noise, drawn in the wrapper (param sampling).
    noise = jax.random.normal(next(ki), (input_size, 64), jnp.float32)

    ws, bs = [], []
    for din, dout in zip(in_dims, out_dims):
        ws.append(0.1 * jax.random.normal(next(ki), (din, dout), jnp.float32))
        bs.append(0.1 * jax.random.normal(next(ki), (dout,), jnp.float32))

    return {"w1_mean": w1_mean, "b1": b1, "alpha": alpha, "noise": noise,
            "ws": ws, "bs": bs}


if __name__ == "__main__":
    key = jax.random.PRNGKey(0)
    k_params, k_x = jax.random.split(key)

    batch = 512           # small demo; kernel lane-packs P sub-tiles and tiles the rest
    input_size = 16
    output_size = 4

    params = make_params(k_params, input_size, output_size)
    x = jax.random.normal(k_x, (batch, input_size), jnp.float32)

    out = mlp_with_ard_forward(x, params)
    out = jax.block_until_ready(out)
    out_f32 = np.asarray(out.astype(jnp.float32))

    # 1) vs. a reference that mirrors the kernel's bf16 matmul / bf16 output
    ref_bf16 = np.asarray(reference_forward_bf16(x, params))
    np.testing.assert_allclose(out_f32, ref_bf16, rtol=2e-2, atol=2e-2)

    # 2) sanity vs. the pure-f32 module semantics (bf16 precision trade-off)
    ref_f32 = np.asarray(reference_forward_f32(x, params))
    np.testing.assert_allclose(out_f32, ref_f32, rtol=5e-2, atol=5e-2)

    # TODO(synk): regularization_loss / print_input_alpha are training-time
    # host-side utilities, not part of the forward pass; not ported to Pallas.
    print("KERNEL_OK")
</pallas_src>

<mosaic_0001>
module attributes {stable_mosaic.version = 11 : i64} {
  func.func @_mlp_ard_kernel(%arg0: i32, %arg1: memref<128x32xbf16, #tpu.memory_space<vmem>>, %arg2: memref<32x128xbf16, #tpu.memory_space<vmem>>, %arg3: memref<7x128x128xbf16, #tpu.memory_space<vmem>>, %arg4: memref<8x1x128xf32, #tpu.memory_space<vmem>>, %arg5: memref<128x128xbf16, #tpu.memory_space<vmem>>) attributes {dimension_semantics = [#tpu.dimension_semantics<parallel>], iteration_bounds = array<i64: 2>, scalar_prefetch = 0 : i64, scratch_operands = 0 : i64, tpu.core_type = #tpu.core_type<tc>, window_params = [{transform_indices = @transform_0, window_bounds = array<i64: 128, 32>}, {pipeline_mode = #tpu.pipeline_mode<synchronous>, transform_indices = @transform_1, window_bounds = array<i64: 32, 128>}, {pipeline_mode = #tpu.pipeline_mode<synchronous>, transform_indices = @transform_2, window_bounds = array<i64: 7, 128, 128>}, {pipeline_mode = #tpu.pipeline_mode<synchronous>, transform_indices = @transform_3, window_bounds = array<i64: 8, 1, 128>}, {transform_indices = @transform_4, window_bounds = array<i64: 128, 128>}]} {
    %c0 = arith.constant 0 : index
    %c0_0 = arith.constant 0 : index
    %0 = vector.load %arg1[%c0, %c0_0] : memref<128x32xbf16, #tpu.memory_space<vmem>>, vector<128x32xbf16>
    %c0_1 = arith.constant 0 : index
    %c0_2 = arith.constant 0 : index
    %1 = vector.load %arg2[%c0_1, %c0_2] : memref<32x128xbf16, #tpu.memory_space<vmem>>, vector<32x128xbf16>
    %cst = arith.constant dense<0.000000e+00> : vector<128x128xf32>
    %2 = tpu.matmul %0, %1, %cst {dimension_numbers = #tpu.dot_dimension_numbers<[1], [0], [0], [1], [0, 0, 1, 1], [], []>} : vector<128x32xbf16>, vector<32x128xbf16>, vector<128x128xf32> -> vector<128x128xf32>
    %c0_3 = arith.constant 0 : index
    %c0_4 = arith.constant 0 : index
    %c0_5 = arith.constant 0 : index
    %3 = vector.load %arg4[%c0_3, %c0_4, %c0_5] : memref<8x1x128xf32, #tpu.memory_space<vmem>>, vector<1x1x128xf32>
    %4 = vector.shape_cast %3 : vector<1x1x128xf32> to vector<1x128xf32>
    %5 = vector.broadcast %4 : vector<1x128xf32> to vector<128x128xf32>
    %6 = arith.addf %2, %5 : vector<128x128xf32>
    %cst_6 = arith.constant 0.000000e+00 : f32
    %7 = vector.broadcast %cst_6 : f32 to vector<128x128xf32>
    %8 = arith.cmpf ogt, %6, %7 : vector<128x128xf32>
    %cst_7 = arith.constant 0.00999999977 : f32
    %9 = vector.broadcast %cst_7 : f32 to vector<128x128xf32>
    %10 = arith.mulf %9, %6 : vector<128x128xf32>
    %11 = arith.select %8, %6, %10 : vector<128x128xi1>, vector<128x128xf32>
    %12 = arith.truncf %11 : vector<128x128xf32> to vector<128x128xbf16>
    %c0_8 = arith.constant 0 : index
    %c0_9 = arith.constant 0 : index
    %c0_10 = arith.constant 0 : index
    %13 = vector.load %arg3[%c0_8, %c0_9, %c0_10] : memref<7x128x128xbf16, #tpu.memory_space<vmem>>, vector<1x128x128xbf16>
    %14 = vector.shape_cast %13 : vector<1x128x128xbf16> to vector<128x128xbf16>
    %cst_11 = arith.constant dense<0.000000e+00> : vector<128x128xf32>
    %15 = tpu.matmul %12, %14, %cst_11 {dimension_numbers = #tpu.dot_dimension_numbers<[1], [0], [0], [1], [0, 0, 1, 1], [], []>} : vector<128x128xbf16>, vector<128x128xbf16>, vector<128x128xf32> -> vector<128x128xf32>
    %c1 = arith.constant 1 : index
    %c0_12 = arith.constant 0 : index
    %c0_13 = arith.constant 0 : index
    %16 = vector.load %arg4[%c1, %c0_12, %c0_13] : memref<8x1x128xf32, #tpu.memory_space<vmem>>, vector<1x1x128xf32>
    %17 = vector.shape_cast %16 : vector<1x1x128xf32> to vector<1x128xf32>
    %18 = vector.broadcast %17 : vector<1x128xf32> to vector<128x128xf32>
    %19 = arith.addf %15, %18 : vector<128x128xf32>
    %cst_14 = arith.constant 0.000000e+00 : f32
    %20 = vector.broadcast %cst_14 : f32 to vector<128x128xf32>
    %21 = arith.cmpf ogt, %19, %20 : vector<128x128xf32>
    %cst_15 = arith.constant 0.00999999977 : f32
    %22 = vector.broadcast %cst_15 : f32 to vector<128x128xf32>
    %23 = arith.mulf %22, %19 : vector<128x128xf32>
    %24 = arith.select %21, %19, %23 : vector<128x128xi1>, vector<128x128xf32>
    %25 = arith.truncf %24 : vector<128x128xf32> to vector<128x128xbf16>
    %c1_16 = arith.constant 1 : index
    %c0_17 = arith.constant 0 : index
    %c0_18 = arith.constant 0 : index
    %26 = vector.load %arg3[%c1_16, %c0_17, %c0_18] : memref<7x128x128xbf16, #tpu.memory_space<vmem>>, vector<1x128x128xbf16>
    %27 = vector.shape_cast %26 : vector<1x128x128xbf16> to vector<128x128xbf16>
    %cst_19 = arith.constant dense<0.000000e+00> : vector<128x128xf32>
    %28 = tpu.matmul %25, %27, %cst_19 {dimension_numbers = #tpu.dot_dimension_numbers<[1], [0], [0], [1], [0, 0, 1, 1], [], []>} : vector<128x128xbf16>, vector<128x128xbf16>, vector<128x128xf32> -> vector<128x128xf32>
    %c2 = arith.constant 2 : index
    %c0_20 = arith.constant 0 : index
    %c0_21 = arith.constant 0 : index
    %29 = vector.load %arg4[%c2, %c0_20, %c0_21] : memref<8x1x128xf32, #tpu.memory_space<vmem>>, vector<1x1x128xf32>
    %30 = vector.shape_cast %29 : vector<1x1x128xf32> to vector<1x128xf32>
    %31 = vector.broadcast %30 : vector<1x128xf32> to vector<128x128xf32>
    %32 = arith.addf %28, %31 : vector<128x128xf32>
    %cst_22 = arith.constant 0.000000e+00 : f32
    %33 = vector.broadcast %cst_22 : f32 to vector<128x128xf32>
    %34 = arith.cmpf ogt, %32, %33 : vector<128x128xf32>
    %cst_23 = arith.constant 0.00999999977 : f32
    %35 = vector.broadcast %cst_23 : f32 to vector<128x128xf32>
    %36 = arith.mulf %35, %32 : vector<128x128xf32>
    %37 = arith.select %34, %32, %36 : vector<128x128xi1>, vector<128x128xf32>
    %38 = arith.truncf %37 : vector<128x128xf32> to vector<128x128xbf16>
    %c2_24 = arith.constant 2 : index
    %c0_25 = arith.constant 0 : index
    %c0_26 = arith.constant 0 : index
    %39 = vector.load %arg3[%c2_24, %c0_25, %c0_26] : memref<7x128x128xbf16, #tpu.memory_space<vmem>>, vector<1x128x128xbf16>
    %40 = vector.shape_cast %39 : vector<1x128x128xbf16> to vector<128x128xbf16>
    %cst_27 = arith.constant dense<0.000000e+00> : vector<128x128xf32>
    %41 = tpu.matmul %38, %40, %cst_27 {dimension_numbers = #tpu.dot_dimension_numbers<[1], [0], [0], [1], [0, 0, 1, 1], [], []>} : vector<128x128xbf16>, vector<128x128xbf16>, vector<128x128xf32> -> vector<128x128xf32>
    %c3 = arith.constant 3 : index
    %c0_28 = arith.constant 0 : index
    %c0_29 = arith.constant 0 : index
    %42 = vector.load %arg4[%c3, %c0_28, %c0_29] : memref<8x1x128xf32, #tpu.memory_space<vmem>>, vector<1x1x128xf32>
    %43 = vector.shape_cast %42 : vector<1x1x128xf32> to vector<1x128xf32>
    %44 = vector.broadcast %43 : vector<1x128xf32> to vector<128x128xf32>
    %45 = arith.addf %41, %44 : vector<128x128xf32>
    %cst_30 = arith.constant 0.000000e+00 : f32
    %46 = vector.broadcast %cst_30 : f32 to vector<128x128xf32>
    %47 = arith.cmpf ogt, %45, %46 : vector<128x128xf32>
    %cst_31 = arith.constant 0.00999999977 : f32
    %48 = vector.broadcast %cst_31 : f32 to vector<128x128xf32>
    %49 = arith.mulf %48, %45 : vector<128x128xf32>
    %50 = arith.select %47, %45, %49 : vector<128x128xi1>, vector<128x128xf32>
    %51 = arith.truncf %50 : vector<128x128xf32> to vector<128x128xbf16>
    %c3_32 = arith.constant 3 : index
    %c0_33 = arith.constant 0 : index
    %c0_34 = arith.constant 0 : index
    %52 = vector.load %arg3[%c3_32, %c0_33, %c0_34] : memref<7x128x128xbf16, #tpu.memory_space<vmem>>, vector<1x128x128xbf16>
    %53 = vector.shape_cast %52 : vector<1x128x128xbf16> to vector<128x128xbf16>
    %cst_35 = arith.constant dense<0.000000e+00> : vector<128x128xf32>
    %54 = tpu.matmul %51, %53, %cst_35 {dimension_numbers = #tpu.dot_dimension_numbers<[1], [0], [0], [1], [0, 0, 1, 1], [], []>} : vector<128x128xbf16>, vector<128x128xbf16>, vector<128x128xf32> -> vector<128x128xf32>
    %c4 = arith.constant 4 : index
    %c0_36 = arith.constant 0 : index
    %c0_37 = arith.constant 0 : index
    %55 = vector.load %arg4[%c4, %c0_36, %c0_37] : memref<8x1x128xf32, #tpu.memory_space<vmem>>, vector<1x1x128xf32>
    %56 = vector.shape_cast %55 : vector<1x1x128xf32> to vector<1x128xf32>
    %57 = vector.broadcast %56 : vector<1x128xf32> to vector<128x128xf32>
    %58 = arith.addf %54, %57 : vector<128x128xf32>
    %cst_38 = arith.constant 0.000000e+00 : f32
    %59 = vector.broadcast %cst_38 : f32 to vector<128x128xf32>
    %60 = arith.cmpf ogt, %58, %59 : vector<128x128xf32>
    %cst_39 = arith.constant 0.00999999977 : f32
    %61 = vector.broadcast %cst_39 : f32 to vector<128x128xf32>
    %62 = arith.mulf %61, %58 : vector<128x128xf32>
    %63 = arith.select %60, %58, %62 : vector<128x128xi1>, vector<128x128xf32>
    %64 = arith.truncf %63 : vector<128x128xf32> to vector<128x128xbf16>
    %c4_40 = arith.constant 4 : index
    %c0_41 = arith.constant 0 : index
    %c0_42 = arith.constant 0 : index
    %65 = vector.load %arg3[%c4_40, %c0_41, %c0_42] : memref<7x128x128xbf16, #tpu.memory_space<vmem>>, vector<1x128x128xbf16>
    %66 = vector.shape_cast %65 : vector<1x128x128xbf16> to vector<128x128xbf16>
    %cst_43 = arith.constant dense<0.000000e+00> : vector<128x128xf32>
    %67 = tpu.matmul %64, %66, %cst_43 {dimension_numbers = #tpu.dot_dimension_numbers<[1], [0], [0], [1], [0, 0, 1, 1], [], []>} : vector<128x128xbf16>, vector<128x128xbf16>, vector<128x128xf32> -> vector<128x128xf32>
    %c5 = arith.constant 5 : index
    %c0_44 = arith.constant 0 : index
    %c0_45 = arith.constant 0 : index
    %68 = vector.load %arg4[%c5, %c0_44, %c0_45] : memref<8x1x128xf32, #tpu.memory_space<vmem>>, vector<1x1x128xf32>
    %69 = vector.shape_cast %68 : vector<1x1x128xf32> to vector<1x128xf32>
    %70 = vector.broadcast %69 : vector<1x128xf32> to vector<128x128xf32>
    %71 = arith.addf %67, %70 : vector<128x128xf32>
    %cst_46 = arith.constant 0.000000e+00 : f32
    %72 = vector.broadcast %cst_46 : f32 to vector<128x128xf32>
    %73 = arith.cmpf ogt, %71, %72 : vector<128x128xf32>
    %cst_47 = arith.constant 0.00999999977 : f32
    %74 = vector.broadcast %cst_47 : f32 to vector<128x128xf32>
    %75 = arith.mulf %74, %71 : vector<128x128xf32>
    %76 = arith.select %73, %71, %75 : vector<128x128xi1>, vector<128x128xf32>
    %77 = arith.truncf %76 : vector<128x128xf32> to vector<128x128xbf16>
    %c5_48 = arith.constant 5 : index
    %c0_49 = arith.constant 0 : index
    %c0_50 = arith.constant 0 : index
    %78 = vector.load %arg3[%c5_48, %c0_49, %c0_50] : memref<7x128x128xbf16, #tpu.memory_space<vmem>>, vector<1x128x128xbf16>
    %79 = vector.shape_cast %78 : vector<1x128x128xbf16> to vector<128x128xbf16>
    %cst_51 = arith.constant dense<0.000000e+00> : vector<128x128xf32>
    %80 = tpu.matmul %77, %79, %cst_51 {dimension_numbers = #tpu.dot_dimension_numbers<[1], [0], [0], [1], [0, 0, 1, 1], [], []>} : vector<128x128xbf16>, vector<128x128xbf16>, vector<128x128xf32> -> vector<128x128xf32>
    %c6 = arith.constant 6 : index
    %c0_52 = arith.constant 0 : index
    %c0_53 = arith.constant 0 : index
    %81 = vector.load %arg4[%c6, %c0_52, %c0_53] : memref<8x1x128xf32, #tpu.memory_space<vmem>>, vector<1x1x128xf32>
    %82 = vector.shape_cast %81 : vector<1x1x128xf32> to vector<1x128xf32>
    %83 = vector.broadcast %82 : vector<1x128xf32> to vector<128x128xf32>
    %84 = arith.addf %80, %83 : vector<128x128xf32>
    %cst_54 = arith.constant 0.000000e+00 : f32
    %85 = vector.broadcast %cst_54 : f32 to vector<128x128xf32>
    %86 = arith.cmpf ogt, %84, %85 : vector<128x128xf32>
    %cst_55 = arith.constant 0.00999999977 : f32
    %87 = vector.broadcast %cst_55 : f32 to vector<128x128xf32>
    %88 = arith.mulf %87, %84 : vector<128x128xf32>
    %89 = arith.select %86, %84, %88 : vector<128x128xi1>, vector<128x128xf32>
    %90 = arith.truncf %89 : vector<128x128xf32> to vector<128x128xbf16>
    %c6_56 = arith.constant 6 : index
    %c0_57 = arith.constant 0 : index
    %c0_58 = arith.constant 0 : index
    %91 = vector.load %arg3[%c6_56, %c0_57, %c0_58] : memref<7x128x128xbf16, #tpu.memory_space<vmem>>, vector<1x128x128xbf16>
    %92 = vector.shape_cast %91 : vector<1x128x128xbf16> to vector<128x128xbf16>
    %cst_59 = arith.constant dense<0.000000e+00> : vector<128x128xf32>
    %93 = tpu.matmul %90, %92, %cst_59 {dimension_numbers = #tpu.dot_dimension_numbers<[1], [0], [0], [1], [0, 0, 1, 1], [], []>} : vector<128x128xbf16>, vector<128x128xbf16>, vector<128x128xf32> -> vector<128x128xf32>
    %c7 = arith.constant 7 : index
    %c0_60 = arith.constant 0 : index
    %c0_61 = arith.constant 0 : index
    %94 = vector.load %arg4[%c7, %c0_60, %c0_61] : memref<8x1x128xf32, #tpu.memory_space<vmem>>, vector<1x1x128xf32>
    %95 = vector.shape_cast %94 : vector<1x1x128xf32> to vector<1x128xf32>
    %96 = vector.broadcast %95 : vector<1x128xf32> to vector<128x128xf32>
    %97 = arith.addf %93, %96 : vector<128x128xf32>
    %98 = arith.truncf %97 : vector<128x128xf32> to vector<128x128xbf16>
    %c0_62 = arith.constant 0 : index
    %c0_63 = arith.constant 0 : index
    %99 = vector.load %arg5[%c0_62, %c0_63] : memref<128x128xbf16, #tpu.memory_space<vmem>>, vector<128x128xbf16>
    tpu.vector_store %arg5[%c0_62, %c0_63], %98 {strides = array<i32>} : memref<128x128xbf16, #tpu.memory_space<vmem>>, vector<128x128xbf16>,
    return
  }
  func.func @transform_0(%arg0: i32) -> (i32, i32) {
    %c0_i32 = arith.constant 0 : i32
    %c0_i32_0 = arith.constant 0 : i32
    return %arg0, %c0_i32 : i32, i32
  }
  func.func @transform_1(%arg0: i32) -> (i32, i32) {
    %c0_i32 = arith.constant 0 : i32
    %c0_i32_0 = arith.constant 0 : i32
    %c0_i32_1 = arith.constant 0 : i32
    return %c0_i32, %c0_i32_0 : i32, i32
  }
  func.func @transform_2(%arg0: i32) -> (i32, i32, i32) {
    %c0_i32 = arith.constant 0 : i32
    %c0_i32_0 = arith.constant 0 : i32
    %c0_i32_1 = arith.constant 0 : i32
    %c0_i32_2 = arith.constant 0 : i32
    return %c0_i32, %c0_i32_0, %c0_i32_1 : i32, i32, i32
  }
  func.func @transform_3(%arg0: i32) -> (i32, i32, i32) {
    %c0_i32 = arith.constant 0 : i32
    %c0_i32_0 = arith.constant 0 : i32
    %c0_i32_1 = arith.constant 0 : i32
    %c0_i32_2 = arith.constant 0 : i32
    return %c0_i32, %c0_i32_0, %c0_i32_1 : i32, i32, i32
  }
  func.func @transform_4(%arg0: i32) -> (i32, i32) {
    %c0_i32 = arith.constant 0 : i32
    %c0_i32_0 = arith.constant 0 : i32
    return %arg0, %c0_i32 : i32, i32
  }
}

</mosaic_0001>

<llo_original>
// kernel: tpu_custom_call.1
$region0: #{tpu_custom_call.1}
  #allocation0 [shape = 'u32[]', space=smem, size = 0x4, offset = 0x4, fixed_abs, tag = 'smem constant byte address 0x4 - core index']
  #allocation1 [shape = 'u32[144,128]{1,0:T(1,128)}', space=vmem, size = 0x12000, scoped, tag = 'internal scratch']
  %s0 = inlined_call_operand.vmem [shape: bf16[256,32], index: 0, kind: input, shape index: {}]
  %s1 = inlined_call_operand.vmem [shape: bf16[32,128], index: 1, kind: input, shape index: {}]
  %s2 = inlined_call_operand.hbm [shape: bf16[7,128,128], index: 2, kind: input, shape index: {}]
  %s3 = inlined_call_operand.vmem [shape: f32[8,1,128], index: 3, kind: input, shape index: {}]
  %s4 = inlined_call_operand.hbm [shape: bf16[256,128], index: 4, kind: output, shape index: {}]
  %s5 = sld [smem:[#allocation0]]
  $region53: #{tpu_custom_call.1} parent=0
    _
  %s7 = ssub.s32 1, %s5
  %s8 = scalar_select 0, %s7, %s5
  $region1: #{tpu_custom_call.1} parent=0
    #allocation2 [shape = 'u8[229376]{0}', space=vmem, size = 0x38000, scoped, tag = 'input window, operand 2, single buffered']
    #allocation3 [shape = 's32[2]{0}', space=sflag, size = 0x8, scoped, tag = 'scoped memory for tpu_custom_call.1']
    #allocation4 [shape = 's32[2]{0}', space=sflag, size = 0x8, scoped, tag = 'scoped memory for tpu_custom_call.1']
    #allocation5 [shape = 'u8[65536]{0}', space=vmem, size = 0x10000, scoped, tag = 'output window, operand 0']
    %9 = vsyncpa [#allocation3], 0
    %10 = vsyncpa [#allocation4], 0
    %s11 = scalar_lea.sflag [#allocation4], 1
    %12 = vsyncpa %s11, 0
    loop: start=0, step=1, limit=4
    $region2: #{tpu_custom_call.1} parent=1 // loop_pre_header
      _
    $region3: #{tpu_custom_call.1} parent=1 // loop_header
      %s14 = sphi 0, %s18
      %p15 = scmp.ge.s32.totalorder %s14, 4
      %s24 = sphi 0, %s26
      %s27 = sphi 0, %s24
      %s28 = sphi 0, %s27
      %s44 = sphi 0, %s28
      %s48 = sphi 0, %s48
      %s50 = sphi 0, %s48
      %s51 = sphi 0, %s50
      %s65 = sphi 0, %s51
      %s69 = sphi 0, %s69
      %s71 = sphi 0, %s69
      %s72 = sphi 0, %s71
      %s86 = sphi 0, %s72
      %s90 = sphi 0, %s90
      %s92 = sphi 0, %s90
      %s93 = sphi 0, %s92
      %s107 = sphi 0, %s93
      %s113 = sphi 0, %s115
      %s116 = sphi 0, %s113
      %s117 = sphi 0, %s116
      %s133 = sphi 0, %s117
    $region4: #{tpu_custom_call.1} parent=1 // loop_header_branch
      %17 = sbr.rel (%p15) target = $region8
    $region5: #{tpu_custom_call.1} parent=1 // loop_body
      %s19 = ssub.s32 %s14, 1
      %s20 = ssub.s32 %s14, 2
      %s21 = sadd.s32 %s14, 1
      %s22 = ssub.s32 %s14, %s21
      %p23 = scmp.eq.s32.totalorder %s22, 0
      %s25 = sadd.s32 %s24, 1
      %s26 = scalar_select %p23, %s24, %s25
      %p29 = pneg %p23
      %p30 = scmp.eq.s32.totalorder %s14, 1
      %p31 = por %p29, %p30
      %p32 = scmp.ne.s32.totalorder %s24, %s27
      %p33 = scmp.eq.s32.totalorder %s14, 0
      %p34 = por %p32, %p33
      %p35 = scmp.ne.s32.totalorder %s24, %s27
      %p36 = scmp.eq.s32.totalorder %s19, 1
      %p37 = por %p35, %p36
      %p38 = scmp.ne.s32.totalorder %s27, %s28
      %p39 = scmp.eq.s32.totalorder %s19, 0
      %p40 = por %p38, %p39
      %p41 = scmp.ne.s32.totalorder %s27, %s28
      %p42 = scmp.eq.s32.totalorder %s20, 1
      %p43 = por %p41, %p42
      %p45 = scmp.ne.s32.totalorder %s28, %s44
      %p46 = scmp.eq.s32.totalorder %s20, 0
      %p47 = por %p45, %p46
      %s49 = sadd.s32 %s48, 1
      %p52 = scmp.eq.s32.totalorder %s14, 1
      %p53 = scmp.ne.s32.totalorder %s48, %s50
      %p54 = scmp.eq.s32.totalorder %s14, 0
      %p55 = por %p53, %p54
      %p56 = scmp.ne.s32.totalorder %s48, %s50
      %p57 = scmp.eq.s32.totalorder %s19, 1
      %p58 = por %p56, %p57
      %p59 = scmp.ne.s32.totalorder %s50, %s51
      %p60 = scmp.eq.s32.totalorder %s19, 0
      %p61 = por %p59, %p60
      %p62 = scmp.ne.s32.totalorder %s50, %s51
      %p63 = scmp.eq.s32.totalorder %s20, 1
      %p64 = por %p62, %p63
      %p66 = scmp.ne.s32.totalorder %s51, %s65
      %p67 = scmp.eq.s32.totalorder %s20, 0
      %p68 = por %p66, %p67
      %s70 = sadd.s32 %s69, 1
      %p73 = scmp.eq.s32.totalorder %s14, 1
      %p74 = scmp.ne.s32.totalorder %s69, %s71
      %p75 = scmp.eq.s32.totalorder %s14, 0
      %p76 = por %p74, %p75
      %p77 = scmp.ne.s32.totalorder %s69, %s71
      %p78 = scmp.eq.s32.totalorder %s19, 1
      %p79 = por %p77, %p78
      %p80 = scmp.ne.s32.totalorder %s71, %s72
      %p81 = scmp.eq.s32.totalorder %s19, 0
      %p82 = por %p80, %p81
      %p83 = scmp.ne.s32.totalorder %s71, %s72
      %p84 = scmp.eq.s32.totalorder %s20, 1
      %p85 = por %p83, %p84
      %p87 = scmp.ne.s32.totalorder %s72, %s86
      %p88 = scmp.eq.s32.totalorder %s20, 0
      %p89 = por %p87, %p88
      %s91 = sadd.s32 %s90, 1
      %p94 = scmp.eq.s32.totalorder %s14, 1
      %p95 = scmp.ne.s32.totalorder %s90, %s92
      %p96 = scmp.eq.s32.totalorder %s14, 0
      %p97 = por %p95, %p96
      %p98 = scmp.ne.s32.totalorder %s90, %s92
      %p99 = scmp.eq.s32.totalorder %s19, 1
      %p100 = por %p98, %p99
      %p101 = scmp.ne.s32.totalorder %s92, %s93
      %p102 = scmp.eq.s32.totalorder %s19, 0
      %p103 = por %p101, %p102
      %p104 = scmp.ne.s32.totalorder %s92, %s93
      %p105 = scmp.eq.s32.totalorder %s20, 1
      %p106 = por %p104, %p105
      %p108 = scmp.ne.s32.totalorder %s93, %s107
      %p109 = scmp.eq.s32.totalorder %s20, 0
      %p110 = por %p108, %p109
      %s111 = ssub.s32 %s14, %s21
      %p112 = scmp.eq.s32.totalorder %s111, 0
      %s114 = sadd.s32 %s113, 1
      %s115 = scalar_select %p112, %s113, %s114
      %p118 = pneg %p112
      %p119 = scmp.eq.s32.totalorder %s14, 1
      %p120 = por %p118, %p119
      %p121 = scmp.ne.s32.totalorder %s113, %s116
      %p122 = scmp.eq.s32.totalorder %s14, 0
      %p123 = por %p121, %p122
      %p124 = scmp.ne.s32.totalorder %s113, %s116
      %p125 = scmp.eq.s32.totalorder %s19, 1
      %p126 = por %p124, %p125
      %p127 = scmp.ne.s32.totalorder %s116, %s117
      %p128 = scmp.eq.s32.totalorder %s19, 0
      %p129 = por %p127, %p128
      %p130 = scmp.ne.s32.totalorder %s116, %s117
      %p131 = scmp.eq.s32.totalorder %s20, 1
      %p132 = por %p130, %p131
      %p134 = scmp.ne.s32.totalorder %s117, %s133
      %p135 = scmp.eq.s32.totalorder %s20, 0
      %p136 = por %p134, %p135
      %p137 = scmp.le.s32.totalorder 1, %s14
      %p138 = scmp.lt.s32.totalorder %s14, 3
      %p139 = pnand %p137, %p138
      %p140 = pneg %p139
      // Predicated region
      $region9: #{tpu_custom_call.1} parent=5 // pred_check
        _
      $region10: #{tpu_custom_call.1} parent=5 // pred_check_branch
        %142 = sbr.rel (%p139) target = $region12
      $region11: #{tpu_custom_call.1} parent=5 // pred_region
        %s143 = ssub.s32 %s14, 1
        // Predicated region
        $region13: #{tpu_custom_call.1} parent=11 // pred_check
          %p144 = pneg %p61
        $region14: #{tpu_custom_call.1} parent=11 // pred_check_branch
          %146 = sbr.rel (%p144) target = $region16
        $region15: #{tpu_custom_call.1} parent=11 // pred_region
          _
        $region16: #{tpu_custom_call.1} parent=11 // pred_fallthru
          _
        // Predicated region
        $region17: #{tpu_custom_call.1} parent=11 // pred_check
          %p147 = pneg %p82
        $region18: #{tpu_custom_call.1} parent=11 // pred_check_branch
          %149 = sbr.rel (%p147) target = $region20
        $region19: #{tpu_custom_call.1} parent=11 // pred_region
          %s151 = ssub.s32 7168, 7168
          %152 = vsyncadd [#allocation3], %s151
          %s153 = sshll.u32 [#allocation2], 4
          %s154 = int_to_ptr.vmem [resolvable:$true] %s153
          %159 = dma.hbm_to_vmem [thread:$0]  %s2, 7168, %s154, [#allocation3], 64, 64, 4
        $region20: #{tpu_custom_call.1} parent=11 // pred_fallthru
          _
        // Predicated region
        $region21: #{tpu_custom_call.1} parent=11 // pred_check
          %p160 = pneg %p103
        $region22: #{tpu_custom_call.1} parent=11 // pred_check_branch
          %162 = sbr.rel (%p160) target = $region24
        $region23: #{tpu_custom_call.1} parent=11 // pred_region
          _
        $region24: #{tpu_custom_call.1} parent=11 // pred_fallthru
          _
      $region12: #{tpu_custom_call.1} parent=5 // pred_fallthru
        _
      %p163 = scmp.lt.s32.totalorder %s14, 2
      // Predicated region
      $region25: #{tpu_custom_call.1} parent=5 // pred_check
        %p164 = pneg %p163
      $region26: #{tpu_custom_call.1} parent=5 // pred_check_branch
        %166 = sbr.rel (%p164) target = $region28
      $region27: #{tpu_custom_call.1} parent=5 // pred_region
        // Predicated region
        $region29: #{tpu_custom_call.1} parent=27 // pred_check
          %p167 = pneg %p34
        $region30: #{tpu_custom_call.1} parent=27 // pred_check_branch
          %169 = sbr.rel (%p167) target = $region32
        $region31: #{tpu_custom_call.1} parent=27 // pred_region
          %s170 = smul.u32 16, %s14
          %p171 = scmp.lt.s32.totalorder %s170, 31
          %s172 = scalar_select %p171, %s170, 31
          %s173 = smul.addr %s172, 4
          %s174 = scalar_lea.vmem %s0, %s173
          %s175 = smul.u32 16, %s14
        $region32: #{tpu_custom_call.1} parent=27 // pred_fallthru
          _
      $region28: #{tpu_custom_call.1} parent=5 // pred_fallthru
        _
      %p176 = scmp.le.s32.totalorder 1, %s14
      %p177 = scmp.lt.s32.totalorder %s14, 3
      %p178 = pnand %p176, %p177
      %p179 = pneg %p178
      // Predicated region
      $region33: #{tpu_custom_call.1} parent=5 // pred_check
        _
      $region34: #{tpu_custom_call.1} parent=5 // pred_check_branch
        %181 = sbr.rel (%p178) target = $region36
      $region35: #{tpu_custom_call.1} parent=5 // pred_region
        %s182 = ssub.s32 %s14, 1
        // Predicated region
        $region37: #{tpu_custom_call.1} parent=35 // pred_check
          %p183 = pneg %p82
        $region38: #{tpu_custom_call.1} parent=35 // pred_check_branch
          %185 = sbr.rel (%p183) target = $region40
        $region39: #{tpu_custom_call.1} parent=35 // pred_region
          %186 = dma.done [#allocation3], 7168
        $region40: #{tpu_custom_call.1} parent=35 // pred_fallthru
          _
        %s187 = smul.u32 16, %s19
        %p188 = scmp.lt.s32.totalorder %s187, 31
        %s189 = scalar_select %p188, %s187, 31
        %s190 = smul.addr %s189, 4
        %s191 = scalar_lea.vmem %s0, %s190
        %p192 = pneg %p40
        %p193 = pneg %p37
        %p194 = pneg %p61
        %p195 = pneg %p58
        %p196 = pneg %p82
        %p197 = pneg %p79
        %p198 = pneg %p103
        %p199 = pneg %p100
        %p200 = pneg %p129
        %p201 = pneg %p126
        %s202 = sand.u32 %s116, 1
        %s203 = scalar_lea.sflag [#allocation4], %s202
        %s204 = sand.u32 %s116, 1
        %s205 = smul.addr %s204, 64
        %s206 = scalar_lea.vmem [#allocation5], %s205
        %s207 = smul.u32 16, %s19
        %p208 = scmp.lt.s32.totalorder %s207, 31
        %s209 = scalar_select %p208, %s207, 31
        %s210 = smul.addr %s209, 4
        %s211 = scalar_lea.vmem %s0, %s210
        %s212 = smul.u32 16, %s19
        %s213 = smul.u32 16, %s19
        %v215 = vld [vmem:[%s211] sm:$0xf]
        %v216 = vld [vmem:[%s211 + $0x4] sm:$0xf]
        %v217 = vld [vmem:[%s211 + $0x8] sm:$0xf]
        %v218 = vld [vmem:[%s211 + $0xc] sm:$0xf]
        %v219 = vld [vmem:[%s211 + $0x10] sm:$0xf]
        %v220 = vld [vmem:[%s211 + $0x14] sm:$0xf]
        %v221 = vld [vmem:[%s211 + $0x18] sm:$0xf]
        %v222 = vld [vmem:[%s211 + $0x1c] sm:$0xf]
        %v223 = vld [vmem:[%s211 + $0x20] sm:$0xf]
        %v224 = vld [vmem:[%s211 + $0x24] sm:$0xf]
        %v225 = vld [vmem:[%s211 + $0x28] sm:$0xf]
        %v226 = vld [vmem:[%s211 + $0x2c] sm:$0xf]
        %v227 = vld [vmem:[%s211 + $0x30] sm:$0xf]
        %v228 = vld [vmem:[%s211 + $0x34] sm:$0xf]
        %v229 = vld [vmem:[%s211 + $0x38] sm:$0xf]
        %v230 = vld [vmem:[%s211 + $0x3c] sm:$0xf]
        %v231 = vld [vmem:[%s1] sm:$0xf]
        %v232 = vld [vmem:[%s1 + $0x4] sm:$0xf]
        %v233 = vld [vmem:[%s1 + $0x8] sm:$0xf]
        %v234 = vld [vmem:[%s1 + $0xc] sm:$0xf]
        %v235 = vld [vmem:[%s3] sm:$0x1]
        %v237 = vlaneseq
        %v238 = vshrl.u32 %v237, 7
        %v239 = vsub.s32 0, %v238
        %v240 = vrot.slane %v235, %v239
        %v258 = vunpack.c.l.b16 %v215
        %v259 = vunpack.c.l.b16 %v216
        %v260 = vunpack.c.l.b16 %v217
        %v261 = vunpack.c.l.b16 %v218
        %v262 = vunpack.c.l.b16 %v219
        %v263 = vunpack.c.l.b16 %v220
        %v264 = vunpack.c.l.b16 %v221
        %v265 = vunpack.c.l.b16 %v222
        %v266 = vunpack.c.l.b16 %v223
        %v267 = vunpack.c.l.b16 %v224
        %v268 = vunpack.c.l.b16 %v225
        %v269 = vunpack.c.l.b16 %v226
        %v270 = vunpack.c.l.b16 %v227
        %v271 = vunpack.c.l.b16 %v228
        %v272 = vunpack.c.l.b16 %v229
        %v273 = vunpack.c.l.b16 %v230
        %v274 = vpack.c.b16 %v259, %v258
        %v275 = vpack.c.b16 %v261, %v260
        %v276 = vpack.c.b16 %v263, %v262
        %v277 = vpack.c.b16 %v265, %v264
        %v278 = vpack.c.b16 %v267, %v266
        %v279 = vpack.c.b16 %v269, %v268
        %v280 = vpack.c.b16 %v271, %v270
        %v281 = vpack.c.b16 %v273, %v272
        %v286 = vunpack.c.l.b16 %v231
        %v287 = vunpack.c.l.b16 %v232
        %v288 = vunpack.c.l.b16 %v233
        %v289 = vunpack.c.l.b16 %v234
        %v290 = vpack.c.b16 %v287, %v286
        %v291 = vpack.c.b16 %v289, %v288
        %vm294 = vcmask 261120
        %v296 = vsel %vm294, %v274, 0
        %v299 = vsel %vm294, %v275, 0
        %v302 = vsel %vm294, %v276, 0
        %v305 = vsel %vm294, %v277, 0
        %v308 = vsel %vm294, %v278, 0
        %v311 = vsel %vm294, %v279, 0
        %v314 = vsel %vm294, %v280, 0
        %v317 = vsel %vm294, %v281, 0
        %319 = vmatprep.subr.bf16.mxu0 0
        %320 = vmatpush1.bf16.msra.mxu0 %v290
        %321 = vmatprep.subr.bf16.mxu0 0
        %322 = vmatpush1.bf16.msra.mxu0 %v291
        %323 = vmatprep.subr.bf16.mxu0 0
        %324 = vmatpush1.bf16.msra.mxu0 0
        %325 = vmatprep.subr.bf16.mxu0 0
        %326 = vmatpush1.bf16.msra.mxu0 0
        %327 = vmatprep.subr.bf16.mxu0 0
        %328 = vmatpush1.bf16.msra.mxu0 0
        %329 = vmatprep.subr.bf16.mxu0 0
        %330 = vmatpush1.bf16.msra.mxu0 0
        %331 = vmatprep.subr.bf16.mxu0 0
        %332 = vmatpush1.bf16.msra.mxu0 0
        %333 = vmatprep.subr.bf16.mxu0 0
        %334 = vmatpush1.bf16.msra.mxu0 0
        %335 = vmatprep.subr.bf16.mxu0 0
        %336 = vmatpush1.bf16.msra.mxu0 0
        %337 = vmatprep.subr.bf16.mxu0 0
        %338 = vmatpush1.bf16.msra.mxu0 0
        %339 = vmatprep.subr.bf16.mxu0 0
        %340 = vmatpush1.bf16.msra.mxu0 0
        %341 = vmatprep.subr.bf16.mxu0 0
        %342 = vmatpush1.bf16.msra.mxu0 0
        %343 = vmatprep.subr.bf16.mxu0 0
        %344 = vmatpush1.bf16.msra.mxu0 0
        %345 = vmatprep.subr.bf16.mxu0 0
        %346 = vmatpush1.bf16.msra.mxu0 0
        %347 = vmatprep.subr.bf16.mxu0 0
        %348 = vmatpush1.bf16.msra.mxu0 0
        %349 = vmatprep.subr.bf16.mxu0 0
        %350 = vmatpush1.bf16.msra.mxu0 0
        %351 = vmatprep.mubr.bf16.mxu0 0
        %352 = vmatmul.mubr.bf16.gmra.mrb[0].mxu0 %v296
        %v353 = vpop.f32.mrb[0].mxu0
        %v354 = vadd.f32 %v240, %v353
        %v355 = vpop.f32.mrb[0].mxu0
        %v356 = vpop.f32.mrb[0].mxu0
        %v357 = vadd.f32 %v240, %v356
        %v358 = vpop.f32.mrb[0].mxu0
        %359 = vmatprep.mubr.bf16.mxu0 0
        %360 = vmatmul.mubr.bf16.gmra.mrb[0].mxu0 %v299
        %v361 = vpop.f32.mrb[0].mxu0
        %v362 = vadd.f32 %v240, %v361
        %v363 = vpop.f32.mrb[0].mxu0
        %v364 = vpop.f32.mrb[0].mxu0
        %v365 = vadd.f32 %v240, %v364
        %v366 = vpop.f32.mrb[0].mxu0
        %367 = vmatprep.mubr.bf16.mxu0 0
        %368 = vmatmul.mubr.bf16.gmra.mrb[0].mxu0 %v302
        %v369 = vpop.f32.mrb[0].mxu0
        %v370 = vadd.f32 %v240, %v369
        %v371 = vpop.f32.mrb[0].mxu0
        %v372 = vpop.f32.mrb[0].mxu0
        %v373 = vadd.f32 %v240, %v372
        %v374 = vpop.f32.mrb[0].mxu0
        %375 = vmatprep.mubr.bf16.mxu0 0
        %376 = vmatmul.mubr.bf16.gmra.mrb[0].mxu0 %v305
        %v377 = vpop.f32.mrb[0].mxu0
        %v378 = vadd.f32 %v240, %v377
        %v379 = vpop.f32.mrb[0].mxu0
        %v380 = vpop.f32.mrb[0].mxu0
        %v381 = vadd.f32 %v240, %v380
        %v382 = vpop.f32.mrb[0].mxu0
        %383 = vmatprep.mubr.bf16.mxu0 0
        %384 = vmatmul.mubr.bf16.gmra.mrb[0].mxu0 %v308
        %v385 = vpop.f32.mrb[0].mxu0
        %v386 = vadd.f32 %v240, %v385
        %v387 = vpop.f32.mrb[0].mxu0
        %v388 = vpop.f32.mrb[0].mxu0
        %v389 = vadd.f32 %v240, %v388
        %v390 = vpop.f32.mrb[0].mxu0
        %391 = vmatprep.mubr.bf16.mxu0 0
        %392 = vmatmul.mubr.bf16.gmra.mrb[0].mxu0 %v311
        %v393 = vpop.f32.mrb[0].mxu0
        %v394 = vadd.f32 %v240, %v393
        %v395 = vpop.f32.mrb[0].mxu0
        %v396 = vpop.f32.mrb[0].mxu0
        %v397 = vadd.f32 %v240, %v396
        %v398 = vpop.f32.mrb[0].mxu0
        %399 = vmatprep.mubr.bf16.mxu0 0
        %400 = vmatmul.mubr.bf16.gmra.mrb[0].mxu0 %v314
        %v401 = vpop.f32.mrb[0].mxu0
        %v402 = vadd.f32 %v240, %v401
        %v403 = vpop.f32.mrb[0].mxu0
        %v404 = vpop.f32.mrb[0].mxu0
        %v405 = vadd.f32 %v240, %v404
        %v406 = vpop.f32.mrb[0].mxu0
        %407 = vmatprep.mubr.bf16.mxu0 0
        %408 = vmatmul.mubr.bf16.gmra.mrb[0].mxu0 %v317
        %v409 = vpop.f32.mrb[0].mxu0
        %v410 = vadd.f32 %v240, %v409
        %v411 = vpop.f32.mrb[0].mxu0
        %v412 = vpop.f32.mrb[0].mxu0
        %v413 = vadd.f32 %v240, %v412
        %v414 = vpop.f32.mrb[0].mxu0
        %415 = vdwg.mxu0
        %vm416 = vcmp.gt.f32.partialorder %v354, 0.0
        %vm417 = vcmp.gt.f32.partialorder %v357, 0.0
        %vm418 = vcmp.gt.f32.partialorder %v362, 0.0
        %vm419 = vcmp.gt.f32.partialorder %v365, 0.0
        %vm420 = vcmp.gt.f32.partialorder %v370, 0.0
        %vm421 = vcmp.gt.f32.partialorder %v373, 0.0
        %vm422 = vcmp.gt.f32.partialorder %v378, 0.0
        %vm423 = vcmp.gt.f32.partialorder %v381, 0.0
        %vm424 = vcmp.gt.f32.partialorder %v386, 0.0
        %vm425 = vcmp.gt.f32.partialorder %v389, 0.0
        %vm426 = vcmp.gt.f32.partialorder %v394, 0.0
        %vm427 = vcmp.gt.f32.partialorder %v397, 0.0
        %vm428 = vcmp.gt.f32.partialorder %v402, 0.0
        %vm429 = vcmp.gt.f32.partialorder %v405, 0.0
        %vm430 = vcmp.gt.f32.partialorder %v410, 0.0
        %vm431 = vcmp.gt.f32.partialorder %v413, 0.0
        %v432 = vmul.f32 %v354, 0.01
        %v433 = vmul.f32 %v357, 0.01
        %v434 = vmul.f32 %v362, 0.01
        %v435 = vmul.f32 %v365, 0.01
        %v436 = vmul.f32 %v370, 0.01
        %v437 = vmul.f32 %v373, 0.01
        %v438 = vmul.f32 %v378, 0.01
        %v439 = vmul.f32 %v381, 0.01
        %v440 = vmul.f32 %v386, 0.01
        %v441 = vmul.f32 %v389, 0.01
        %v442 = vmul.f32 %v394, 0.01
        %v443 = vmul.f32 %v397, 0.01
        %v444 = vmul.f32 %v402, 0.01
        %v445 = vmul.f32 %v405, 0.01
        %v446 = vmul.f32 %v410, 0.01
        %v447 = vmul.f32 %v413, 0.01
        %v448 = vsel %vm416, %v354, %v432
        %v449 = vsel %vm417, %v357, %v433
        %v450 = vsel %vm418, %v362, %v434
        %v451 = vsel %vm419, %v365, %v435
        %v452 = vsel %vm420, %v370, %v436
        %v453 = vsel %vm421, %v373, %v437
        %v454 = vsel %vm422, %v378, %v438
        %v455 = vsel %vm423, %v381, %v439
        %v456 = vsel %vm424, %v386, %v440
        %v457 = vsel %vm425, %v389, %v441
        %v458 = vsel %vm426, %v394, %v442
        %v459 = vsel %vm427, %v397, %v443
        %v460 = vsel %vm428, %v402, %v444
        %v461 = vsel %vm429, %v405, %v445
        %v462 = vsel %vm430, %v410, %v446
        %v463 = vsel %vm431, %v413, %v447
        %v464 = vpack.c.bf16 %v449, %v448
        %v465 = vpack.c.bf16 %v451, %v450
        %v466 = vpack.c.bf16 %v453, %v452
        %v467 = vpack.c.bf16 %v455, %v454
        %v468 = vpack.c.bf16 %v457, %v456
        %v469 = vpack.c.bf16 %v459, %v458
        %v470 = vpack.c.bf16 %v461, %v460
        %v471 = vpack.c.bf16 %v463, %v462
        %v472 = vld [vmem:[#allocation2] sm:$0xf]
        %v473 = vld [vmem:[#allocation2 + $0x4] sm:$0xf]
        %v474 = vld [vmem:[#allocation2 + $0x8] sm:$0xf]
        %v475 = vld [vmem:[#allocation2 + $0xc] sm:$0xf]
        %v476 = vld [vmem:[#allocation2 + $0x10] sm:$0xf]
        %v477 = vld [vmem:[#allocation2 + $0x14] sm:$0xf]
        %v478 = vld [vmem:[#allocation2 + $0x18] sm:$0xf]
        %v479 = vld [vmem:[#allocation2 + $0x1c] sm:$0xf]
        %v480 = vld [vmem:[#allocation2 + $0x20] sm:$0xf]
        %v481 = vld [vmem:[#allocation2 + $0x24] sm:$0xf]
        %v482 = vld [vmem:[#allocation2 + $0x28] sm:$0xf]
        %v483 = vld [vmem:[#allocation2 + $0x2c] sm:$0xf]
        %v484 = vld [vmem:[#allocation2 + $0x30] sm:$0xf]
        %v485 = vld [vmem:[#allocation2 + $0x34] sm:$0xf]
        %v486 = vld [vmem:[#allocation2 + $0x38] sm:$0xf]
        %v487 = vld [vmem:[#allocation2 + $0x3c] sm:$0xf]
        %s488 = scalar_lea.vmem %s3, 1
        %v489 = vld [vmem:[%s488] sm:$0x1]
        %v491 = vlaneseq
        %v492 = vshrl.u32 %v491, 7
        %v493 = vsub.s32 0, %v492
        %v494 = vrot.slane %v489, %v493
        %v512 = vunpack.c.l.b16 %v472
        %v513 = vunpack.c.l.b16 %v473
        %v514 = vunpack.c.l.b16 %v474
        %v515 = vunpack.c.l.b16 %v475
        %v516 = vunpack.c.l.b16 %v476
        %v517 = vunpack.c.l.b16 %v477
        %v518 = vunpack.c.l.b16 %v478
        %v519 = vunpack.c.l.b16 %v479
        %v520 = vunpack.c.l.b16 %v480
        %v521 = vunpack.c.l.b16 %v481
        %v522 = vunpack.c.l.b16 %v482
        %v523 = vunpack.c.l.b16 %v483
        %v524 = vunpack.c.l.b16 %v484
        %v525 = vunpack.c.l.b16 %v485
        %v526 = vunpack.c.l.b16 %v486
        %v527 = vunpack.c.l.b16 %v487
        %v528 = vpack.c.b16 %v513, %v512
        %v529 = vpack.c.b16 %v515, %v514
        %v530 = vpack.c.b16 %v517, %v516
        %v531 = vpack.c.b16 %v519, %v518
        %v532 = vpack.c.b16 %v521, %v520
        %v533 = vpack.c.b16 %v523, %v522
        %v534 = vpack.c.b16 %v525, %v524
        %v535 = vpack.c.b16 %v527, %v526
        %544 = vmatprep.subr.bf16.mxu0 0
        %545 = vmatpush1.bf16.msra.mxu0 %v528
        %546 = vmatprep.subr.bf16.mxu0 0
        %547 = vmatpush1.bf16.msra.mxu0 %v529
        %548 = vmatprep.subr.bf16.mxu0 0
        %549 = vmatpush1.bf16.msra.mxu0 %v530
        %550 = vmatprep.subr.bf16.mxu0 0
        %551 = vmatpush1.bf16.msra.mxu0 %v531
        %552 = vmatprep.subr.bf16.mxu0 0
        %553 = vmatpush1.bf16.msra.mxu0 %v532
        %554 = vmatprep.subr.bf16.mxu0 0
        %555 = vmatpush1.bf16.msra.mxu0 %v533
        %556 = vmatprep.subr.bf16.mxu0 0
        %557 = vmatpush1.bf16.msra.mxu0 %v534
        %558 = vmatprep.subr.bf16.mxu0 0
        %559 = vmatpush1.bf16.msra.mxu0 %v535
        %560 = vmatprep.subr.bf16.mxu0 0
        %561 = vmatpush1.bf16.msra.mxu0 0
        %562 = vmatprep.subr.bf16.mxu0 0
        %563 = vmatpush1.bf16.msra.mxu0 0
        %564 = vmatprep.subr.bf16.mxu0 0
        %565 = vmatpush1.bf16.msra.mxu0 0
        %566 = vmatprep.subr.bf16.mxu0 0
        %567 = vmatpush1.bf16.msra.mxu0 0
        %568 = vmatprep.subr.bf16.mxu0 0
        %569 = vmatpush1.bf16.msra.mxu0 0
        %570 = vmatprep.subr.bf16.mxu0 0
        %571 = vmatpush1.bf16.msra.mxu0 0
        %572 = vmatprep.subr.bf16.mxu0 0
        %573 = vmatpush1.bf16.msra.mxu0 0
        %574 = vmatprep.subr.bf16.mxu0 0
        %575 = vmatpush1.bf16.msra.mxu0 0
        %576 = vmatprep.mubr.bf16.mxu0 0
        %577 = vmatmul.mubr.bf16.gmra.mrb[0].mxu0 %v464
        %v578 = vpop.f32.mrb[0].mxu0
        %v579 = vadd.f32 %v494, %v578
        %v580 = vpop.f32.mrb[0].mxu0
        %v581 = vpop.f32.mrb[0].mxu0
        %v582 = vadd.f32 %v494, %v581
        %v583 = vpop.f32.mrb[0].mxu0
        %584 = vmatprep.mubr.bf16.mxu0 0
        %585 = vmatmul.mubr.bf16.gmra.mrb[0].mxu0 %v465
        %v586 = vpop.f32.mrb[0].mxu0
        %v587 = vadd.f32 %v494, %v586
        %v588 = vpop.f32.mrb[0].mxu0
        %v589 = vpop.f32.mrb[0].mxu0
        %v590 = vadd.f32 %v494, %v589
        %v591 = vpop.f32.mrb[0].mxu0
        %592 = vmatprep.mubr.bf16.mxu0 0
        %593 = vmatmul.mubr.bf16.gmra.mrb[0].mxu0 %v466
        %v594 = vpop.f32.mrb[0].mxu0
        %v595 = vadd.f32 %v494, %v594
        %v596 = vpop.f32.mrb[0].mxu0
        %v597 = vpop.f32.mrb[0].mxu0
        %v598 = vadd.f32 %v494, %v597
        %v599 = vpop.f32.mrb[0].mxu0
        %600 = vmatprep.mubr.bf16.mxu0 0
        %601 = vmatmul.mubr.bf16.gmra.mrb[0].mxu0 %v467
        %v602 = vpop.f32.mrb[0].mxu0
        %v603 = vadd.f32 %v494, %v602
        %v604 = vpop.f32.mrb[0].mxu0
        %v605 = vpop.f32.mrb[0].mxu0
        %v606 = vadd.f32 %v494, %v605
        %v607 = vpop.f32.mrb[0].mxu0
        %608 = vmatprep.mubr.bf16.mxu0 0
        %609 = vmatmul.mubr.bf16.gmra.mrb[0].mxu0 %v468
        %v610 = vpop.f32.mrb[0].mxu0
        %v611 = vadd.f32 %v494, %v610
        %v612 = vpop.f32.mrb[0].mxu0
        %v613 = vpop.f32.mrb[0].mxu0
        %v614 = vadd.f32 %v494, %v613
        %v615 = vpop.f32.mrb[0].mxu0
        %616 = vmatprep.mubr.bf16.mxu0 0
        %617 = vmatmul.mubr.bf16.gmra.mrb[0].mxu0 %v469
        %v618 = vpop.f32.mrb[0].mxu0
        %v619 = vadd.f32 %v494, %v618
        %v620 = vpop.f32.mrb[0].mxu0
        %v621 = vpop.f32.mrb[0].mxu0
        %v622 = vadd.f32 %v494, %v621
        %v623 = vpop.f32.mrb[0].mxu0
        %624 = vmatprep.mubr.bf16.mxu0 0
        %625 = vmatmul.mubr.bf16.gmra.mrb[0].mxu0 %v470
        %v626 = vpop.f32.mrb[0].mxu0
        %v627 = vadd.f32 %v494, %v626
        %v628 = vpop.f32.mrb[0].mxu0
        %v629 = vpop.f32.mrb[0].mxu0
        %v630 = vadd.f32 %v494, %v629
        %v631 = vpop.f32.mrb[0].mxu0
        %632 = vmatprep.mubr.bf16.mxu0 0
        %633 = vmatmul.mubr.bf16.gmra.mrb[0].mxu0 %v471
        %v634 = vpop.f32.mrb[0].mxu0
        %v635 = vadd.f32 %v494, %v634
        %v636 = vpop.f32.mrb[0].mxu0
        %v637 = vpop.f32.mrb[0].mxu0
        %v638 = vadd.f32 %v494, %v637
        %v639 = vpop.f32.mrb[0].mxu0
        %640 = vdwg.mxu0
        %vm641 = vcmp.gt.f32.partialorder %v579, 0.0
        %vm642 = vcmp.gt.f32.partialorder %v582, 0.0
        %vm643 = vcmp.gt.f32.partialorder %v587, 0.0
        %vm644 = vcmp.gt.f32.partialorder %v590, 0.0
        %vm645 = vcmp.gt.f32.partialorder %v595, 0.0
        %vm646 = vcmp.gt.f32.partialorder %v598, 0.0
        %vm647 = vcmp.gt.f32.partialorder %v603, 0.0
        %vm648 = vcmp.gt.f32.partialorder %v606, 0.0
        %vm649 = vcmp.gt.f32.partialorder %v611, 0.0
        %vm650 = vcmp.gt.f32.partialorder %v614, 0.0
        %vm651 = vcmp.gt.f32.partialorder %v619, 0.0
        %vm652 = vcmp.gt.f32.partialorder %v622, 0.0
        %vm653 = vcmp.gt.f32.partialorder %v627, 0.0
        %vm654 = vcmp.gt.f32.partialorder %v630, 0.0
        %vm655 = vcmp.gt.f32.partialorder %v635, 0.0
        %vm656 = vcmp.gt.f32.partialorder %v638, 0.0
        %v657 = vmul.f32 %v579, 0.01
        %v658 = vmul.f32 %v582, 0.01
        %v659 = vmul.f32 %v587, 0.01
        %v660 = vmul.f32 %v590, 0.01
        %v661 = vmul.f32 %v595, 0.01
        %v662 = vmul.f32 %v598, 0.01
        %v663 = vmul.f32 %v603, 0.01
        %v664 = vmul.f32 %v606, 0.01
        %v665 = vmul.f32 %v611, 0.01
        %v666 = vmul.f32 %v614, 0.01
        %v667 = vmul.f32 %v619, 0.01
        %v668 = vmul.f32 %v622, 0.01
        %v669 = vmul.f32 %v627, 0.01
        %v670 = vmul.f32 %v630, 0.01
        %v671 = vmul.f32 %v635, 0.01
        %v672 = vmul.f32 %v638, 0.01
        %v673 = vsel %vm641, %v579, %v657
        %v674 = vsel %vm642, %v582, %v658
        %v675 = vsel %vm643, %v587, %v659
        %v676 = vsel %vm644, %v590, %v660
        %v677 = vsel %vm645, %v595, %v661
        %v678 = vsel %vm646, %v598, %v662
        %v679 = vsel %vm647, %v603, %v663
        %v680 = vsel %vm648, %v606, %v664
        %v681 = vsel %vm649, %v611, %v665
        %v682 = vsel %vm650, %v614, %v666
        %v683 = vsel %vm651, %v619, %v667
        %v684 = vsel %vm652, %v622, %v668
        %v685 = vsel %vm653, %v627, %v669
        %v686 = vsel %vm654, %v630, %v670
        %v687 = vsel %vm655, %v635, %v671
        %v688 = vsel %vm656, %v638, %v672
        %v689 = vpack.c.bf16 %v674, %v673
        %v690 = vpack.c.bf16 %v676, %v675
        %v691 = vpack.c.bf16 %v678, %v677
        %v692 = vpack.c.bf16 %v680, %v679
        %v693 = vpack.c.bf16 %v682, %v681
        %v694 = vpack.c.bf16 %v684, %v683
        %v695 = vpack.c.bf16 %v686, %v685
        %v696 = vpack.c.bf16 %v688, %v687
        %s697 = scalar_lea.vmem [#allocation2], 64
        %v698 = vld [vmem:[%s697] sm:$0xf]
        %v699 = vld [vmem:[%s697 + $0x4] sm:$0xf]
        %v700 = vld [vmem:[%s697 + $0x8] sm:$0xf]
        %v701 = vld [vmem:[%s697 + $0xc] sm:$0xf]
        %v702 = vld [vmem:[%s697 + $0x10] sm:$0xf]
        %v703 = vld [vmem:[%s697 + $0x14] sm:$0xf]
        %v704 = vld [vmem:[%s697 + $0x18] sm:$0xf]
        %v705 = vld [vmem:[%s697 + $0x1c] sm:$0xf]
        %v706 = vld [vmem:[%s697 + $0x20] sm:$0xf]
        %v707 = vld [vmem:[%s697 + $0x24] sm:$0xf]
        %v708 = vld [vmem:[%s697 + $0x28] sm:$0xf]
        %v709 = vld [vmem:[%s697 + $0x2c] sm:$0xf]
        %v710 = vld [vmem:[%s697 + $0x30] sm:$0xf]
        %v711 = vld [vmem:[%s697 + $0x34] sm:$0xf]
        %v712 = vld [vmem:[%s697 + $0x38] sm:$0xf]
        %v713 = vld [vmem:[%s697 + $0x3c] sm:$0xf]
        %s714 = scalar_lea.vmem %s3, 2
        %v715 = vld [vmem:[%s714] sm:$0x1]
        %v717 = vlaneseq
        %v718 = vshrl.u32 %v717, 7
        %v719 = vsub.s32 0, %v718
        %v720 = vrot.slane %v715, %v719
        %v738 = vunpack.c.l.b16 %v698
        %v739 = vunpack.c.l.b16 %v699
        %v740 = vunpack.c.l.b16 %v700
        %v741 = vunpack.c.l.b16 %v701
        %v742 = vunpack.c.l.b16 %v702
        %v743 = vunpack.c.l.b16 %v703
        %v744 = vunpack.c.l.b16 %v704
        %v745 = vunpack.c.l.b16 %v705
        %v746 = vunpack.c.l.b16 %v706
        %v747 = vunpack.c.l.b16 %v707
        %v748 = vunpack.c.l.b16 %v708
        %v749 = vunpack.c.l.b16 %v709
        %v750 = vunpack.c.l.b16 %v710
        %v751 = vunpack.c.l.b16 %v711
        %v752 = vunpack.c.l.b16 %v712
        %v753 = vunpack.c.l.b16 %v713
        %v754 = vpack.c.b16 %v739, %v738
        %v755 = vpack.c.b16 %v741, %v740
        %v756 = vpack.c.b16 %v743, %v742
        %v757 = vpack.c.b16 %v745, %v744
        %v758 = vpack.c.b16 %v747, %v746
        %v759 = vpack.c.b16 %v749, %v748
        %v760 = vpack.c.b16 %v751, %v750
        %v761 = vpack.c.b16 %v753, %v752
        %770 = vmatprep.subr.bf16.mxu0 0
        %771 = vmatpush1.bf16.msra.mxu0 %v754
        %772 = vmatprep.subr.bf16.mxu0 0
        %773 = vmatpush1.bf16.msra.mxu0 %v755
        %774 = vmatprep.subr.bf16.mxu0 0
        %775 = vmatpush1.bf16.msra.mxu0 %v756
        %776 = vmatprep.subr.bf16.mxu0 0
        %777 = vmatpush1.bf16.msra.mxu0 %v757
        %778 = vmatprep.subr.bf16.mxu0 0
        %779 = vmatpush1.bf16.msra.mxu0 %v758
        %780 = vmatprep.subr.bf16.mxu0 0
        %781 = vmatpush1.bf16.msra.mxu0 %v759
        %782 = vmatprep.subr.bf16.mxu0 0
        %783 = vmatpush1.bf16.msra.mxu0 %v760
        %784 = vmatprep.subr.bf16.mxu0 0
        %785 = vmatpush1.bf16.msra.mxu0 %v761
        %786 = vmatprep.subr.bf16.mxu0 0
        %787 = vmatpush1.bf16.msra.mxu0 0
        %788 = vmatprep.subr.bf16.mxu0 0
        %789 = vmatpush1.bf16.msra.mxu0 0
        %790 = vmatprep.subr.bf16.mxu0 0
        %791 = vmatpush1.bf16.msra.mxu0 0
        %792 = vmatprep.subr.bf16.mxu0 0
        %793 = vmatpush1.bf16.msra.mxu0 0
        %794 = vmatprep.subr.bf16.mxu0 0
        %795 = vmatpush1.bf16.msra.mxu0 0
        %796 = vmatprep.subr.bf16.mxu0 0
        %797 = vmatpush1.bf16.msra.mxu0 0
        %798 = vmatprep.subr.bf16.mxu0 0
        %799 = vmatpush1.bf16.msra.mxu0 0
        %800 = vmatprep.subr.bf16.mxu0 0
        %801 = vmatpush1.bf16.msra.mxu0 0
        %802 = vmatprep.mubr.bf16.mxu0 0
        %803 = vmatmul.mubr.bf16.gmra.mrb[0].mxu0 %v689
        %v804 = vpop.f32.mrb[0].mxu0
        %v805 = vadd.f32 %v720, %v804
        %v806 = vpop.f32.mrb[0].mxu0
        %v807 = vpop.f32.mrb[0].mxu0
        %v808 = vadd.f32 %v720, %v807
        %v809 = vpop.f32.mrb[0].mxu0
        %810 = vmatprep.mubr.bf16.mxu0 0
        %811 = vmatmul.mubr.bf16.gmra.mrb[0].mxu0 %v690
        %v812 = vpop.f32.mrb[0].mxu0
        %v813 = vadd.f32 %v720, %v812
        %v814 = vpop.f32.mrb[0].mxu0
        %v815 = vpop.f32.mrb[0].mxu0
        %v816 = vadd.f32 %v720, %v815
        %v817 = vpop.f32.mrb[0].mxu0
        %818 = vmatprep.mubr.bf16.mxu0 0
        %819 = vmatmul.mubr.bf16.gmra.mrb[0].mxu0 %v691
        %v820 = vpop.f32.mrb[0].mxu0
        %v821 = vadd.f32 %v720, %v820
        %v822 = vpop.f32.mrb[0].mxu0
        %v823 = vpop.f32.mrb[0].mxu0
        %v824 = vadd.f32 %v720, %v823
        %v825 = vpop.f32.mrb[0].mxu0
        %826 = vmatprep.mubr.bf16.mxu0 0
        %827 = vmatmul.mubr.bf16.gmra.mrb[0].mxu0 %v692
        %v828 = vpop.f32.mrb[0].mxu0
        %v829 = vadd.f32 %v720, %v828
        %v830 = vpop.f32.mrb[0].mxu0
        %v831 = vpop.f32.mrb[0].mxu0
        %v832 = vadd.f32 %v720, %v831
        %v833 = vpop.f32.mrb[0].mxu0
        %834 = vmatprep.mubr.bf16.mxu0 0
        %835 = vmatmul.mubr.bf16.gmra.mrb[0].mxu0 %v693
        %v836 = vpop.f32.mrb[0].mxu0
        %v837 = vadd.f32 %v720, %v836
        %v838 = vpop.f32.mrb[0].mxu0
        %v839 = vpop.f32.mrb[0].mxu0
        %v840 = vadd.f32 %v720, %v839
        %v841 = vpop.f32.mrb[0].mxu0
        %842 = vmatprep.mubr.bf16.mxu0 0
        %843 = vmatmul.mubr.bf16.gmra.mrb[0].mxu0 %v694
        %v844 = vpop.f32.mrb[0].mxu0
        %v845 = vadd.f32 %v720, %v844
        %v846 = vpop.f32.mrb[0].mxu0
        %v847 = vpop.f32.mrb[0].mxu0
        %v848 = vadd.f32 %v720, %v847
        %v849 = vpop.f32.mrb[0].mxu0
        %850 = vmatprep.mubr.bf16.mxu0 0
        %851 = vmatmul.mubr.bf16.gmra.mrb[0].mxu0 %v695
        %v852 = vpop.f32.mrb[0].mxu0
        %v853 = vadd.f32 %v720, %v852
        %v854 = vpop.f32.mrb[0].mxu0
        %v855 = vpop.f32.mrb[0].mxu0
        %v856 = vadd.f32 %v720, %v855
        %v857 = vpop.f32.mrb[0].mxu0
        %858 = vmatprep.mubr.bf16.mxu0 0
        %859 = vmatmul.mubr.bf16.gmra.mrb[0].mxu0 %v696
        %v860 = vpop.f32.mrb[0].mxu0
        %v861 = vadd.f32 %v720, %v860
        %v862 = vpop.f32.mrb[0].mxu0
        %v863 = vpop.f32.mrb[0].mxu0
        %v864 = vadd.f32 %v720, %v863
        %v865 = vpop.f32.mrb[0].mxu0
        %866 = vdwg.mxu0
        %vm867 = vcmp.gt.f32.partialorder %v805, 0.0
        %vm868 = vcmp.gt.f32.partialorder %v808, 0.0
        %vm869 = vcmp.gt.f32.partialorder %v813, 0.0
        %vm870 = vcmp.gt.f32.partialorder %v816, 0.0
        %vm871 = vcmp.gt.f32.partialorder %v821, 0.0
        %vm872 = vcmp.gt.f32.partialorder %v824, 0.0
        %vm873 = vcmp.gt.f32.partialorder %v829, 0.0
        %vm874 = vcmp.gt.f32.partialorder %v832, 0.0
        %vm875 = vcmp.gt.f32.partialorder %v837, 0.0
        %vm876 = vcmp.gt.f32.partialorder %v840, 0.0
        %vm877 = vcmp.gt.f32.partialorder %v845, 0.0
        %vm878 = vcmp.gt.f32.partialorder %v848, 0.0
        %vm879 = vcmp.gt.f32.partialorder %v853, 0.0
        %vm880 = vcmp.gt.f32.partialorder %v856, 0.0
        %vm881 = vcmp.gt.f32.partialorder %v861, 0.0
        %vm882 = vcmp.gt.f32.partialorder %v864, 0.0
        %v883 = vmul.f32 %v805, 0.01
        %v884 = vmul.f32 %v808, 0.01
        %v885 = vmul.f32 %v813, 0.01
        %v886 = vmul.f32 %v816, 0.01
        %v887 = vmul.f32 %v821, 0.01
        %v888 = vmul.f32 %v824, 0.01
        %v889 = vmul.f32 %v829, 0.01
        %v890 = vmul.f32 %v832, 0.01
        %v891 = vmul.f32 %v837, 0.01
        %v892 = vmul.f32 %v840, 0.01
        %v893 = vmul.f32 %v845, 0.01
        %v894 = vmul.f32 %v848, 0.01
        %v895 = vmul.f32 %v853, 0.01
        %v896 = vmul.f32 %v856, 0.01
        %v897 = vmul.f32 %v861, 0.01
        %v898 = vmul.f32 %v864, 0.01
        %v899 = vsel %vm867, %v805, %v883
        %v900 = vsel %vm868, %v808, %v884
        %v901 = vsel %vm869, %v813, %v885
        %v902 = vsel %vm870, %v816, %v886
        %v903 = vsel %vm871, %v821, %v887
        %v904 = vsel %vm872, %v824, %v888
        %v905 = vsel %vm873, %v829, %v889
        %v906 = vsel %vm874, %v832, %v890
        %v907 = vsel %vm875, %v837, %v891
        %v908 = vsel %vm876, %v840, %v892
        %v909 = vsel %vm877, %v845, %v893
        %v910 = vsel %vm878, %v848, %v894
        %v911 = vsel %vm879, %v853, %v895
        %v912 = vsel %vm880, %v856, %v896
        %v913 = vsel %vm881, %v861, %v897
        %v914 = vsel %vm882, %v864, %v898
        %v915 = vpack.c.bf16 %v900, %v899
        %v916 = vpack.c.bf16 %v902, %v901
        %v917 = vpack.c.bf16 %v904, %v903
        %v918 = vpack.c.bf16 %v906, %v905
        %v919 = vpack.c.bf16 %v908, %v907
        %v920 = vpack.c.bf16 %v910, %v909
        %v921 = vpack.c.bf16 %v912, %v911
        %v922 = vpack.c.bf16 %v914, %v913
        %s923 = scalar_lea.vmem [#allocation2], 128
        %v924 = vld [vmem:[%s923] sm:$0xf]
        %v925 = vld [vmem:[%s923 + $0x4] sm:$0xf]
        %v926 = vld [vmem:[%s923 + $0x8] sm:$0xf]
        %v927 = vld [vmem:[%s923 + $0xc] sm:$0xf]
        %v928 = vld [vmem:[%s923 + $0x10] sm:$0xf]
        %v929 = vld [vmem:[%s923 + $0x14] sm:$0xf]
        %v930 = vld [vmem:[%s923 + $0x18] sm:$0xf]
        %v931 = vld [vmem:[%s923 + $0x1c] sm:$0xf]
        %v932 = vld [vmem:[%s923 + $0x20] sm:$0xf]
        %v933 = vld [vmem:[%s923 + $0x24] sm:$0xf]
        %v934 = vld [vmem:[%s923 + $0x28] sm:$0xf]
        %v935 = vld [vmem:[%s923 + $0x2c] sm:$0xf]
        %v936 = vld [vmem:[%s923 + $0x30] sm:$0xf]
        %v937 = vld [vmem:[%s923 + $0x34] sm:$0xf]
        %v938 = vld [vmem:[%s923 + $0x38] sm:$0xf]
        %v939 = vld [vmem:[%s923 + $0x3c] sm:$0xf]
        %s940 = scalar_lea.vmem %s3, 3
        %v941 = vld [vmem:[%s940] sm:$0x1]
        %v943 = vlaneseq
        %v944 = vshrl.u32 %v943, 7
        %v945 = vsub.s32 0, %v944
        %v946 = vrot.slane %v941, %v945
        %v964 = vunpack.c.l.b16 %v924
        %v965 = vunpack.c.l.b16 %v925
        %v966 = vunpack.c.l.b16 %v926
        %v967 = vunpack.c.l.b16 %v927
        %v968 = vunpack.c.l.b16 %v928
        %v969 = vunpack.c.l.b16 %v929
        %v970 = vunpack.c.l.b16 %v930
        %v971 = vunpack.c.l.b16 %v931
        %v972 = vunpack.c.l.b16 %v932
        %v973 = vunpack.c.l.b16 %v933
        %v974 = vunpack.c.l.b16 %v934
        %v975 = vunpack.c.l.b16 %v935
        %v976 = vunpack.c.l.b16 %v936
        %v977 = vunpack.c.l.b16 %v937
        %v978 = vunpack.c.l.b16 %v938
        %v979 = vunpack.c.l.b16 %v939
        %v980 = vpack.c.b16 %v965, %v964
        %v981 = vpack.c.b16 %v967, %v966
        %v982 = vpack.c.b16 %v969, %v968
        %v983 = vpack.c.b16 %v971, %v970
        %v984 = vpack.c.b16 %v973, %v972
        %v985 = vpack.c.b16 %v975, %v974
        %v986 = vpack.c.b16 %v977, %v976
        %v987 = vpack.c.b16 %v979, %v978
        %996 = vmatprep.subr.bf16.mxu0 0
        %997 = vmatpush1.bf16.msra.mxu0 %v980
        %998 = vmatprep.subr.bf16.mxu0 0
        %999 = vmatpush1.bf16.msra.mxu0 %v981
        %1000 = vmatprep.subr.bf16.mxu0 0
        %1001 = vmatpush1.bf16.msra.mxu0 %v982
        %1002 = vmatprep.subr.bf16.mxu0 0
        %1003 = vmatpush1.bf16.msra.mxu0 %v983
        %1004 = vmatprep.subr.bf16.mxu0 0
        %1005 = vmatpush1.bf16.msra.mxu0 %v984
        %1006 = vmatprep.subr.bf16.mxu0 0
        %1007 = vmatpush1.bf16.msra.mxu0 %v985
        %1008 = vmatprep.subr.bf16.mxu0 0
        %1009 = vmatpush1.bf16.msra.mxu0 %v986
        %1010 = vmatprep.subr.bf16.mxu0 0
        %1011 = vmatpush1.bf16.msra.mxu0 %v987
        %1012 = vmatprep.subr.bf16.mxu0 0
        %1013 = vmatpush1.bf16.msra.mxu0 0
        %1014 = vmatprep.subr.bf16.mxu0 0
        %1015 = vmatpush1.bf16.msra.mxu0 0
        %1016 = vmatprep.subr.bf16.mxu0 0
        %1017 = vmatpush1.bf16.msra.mxu0 0
        %1018 = vmatprep.subr.bf16.mxu0 0
        %1019 = vmatpush1.bf16.msra.mxu0 0
        %1020 = vmatprep.subr.bf16.mxu0 0
        %1021 = vmatpush1.bf16.msra.mxu0 0
        %1022 = vmatprep.subr.bf16.mxu0 0
        %1023 = vmatpush1.bf16.msra.mxu0 0
        %1024 = vmatprep.subr.bf16.mxu0 0
        %1025 = vmatpush1.bf16.msra.mxu0 0
        %1026 = vmatprep.subr.bf16.mxu0 0
        %1027 = vmatpush1.bf16.msra.mxu0 0
        %1028 = vmatprep.mubr.bf16.mxu0 0
        %1029 = vmatmul.mubr.bf16.gmra.mrb[0].mxu0 %v915
        %v1030 = vpop.f32.mrb[0].mxu0
        %v1031 = vadd.f32 %v946, %v1030
        %v1032 = vpop.f32.mrb[0].mxu0
        %v1033 = vpop.f32.mrb[0].mxu0
        %v1034 = vadd.f32 %v946, %v1033
        %v1035 = vpop.f32.mrb[0].mxu0
        %1036 = vmatprep.mubr.bf16.mxu0 0
        %1037 = vmatmul.mubr.bf16.gmra.mrb[0].mxu0 %v916
        %v1038 = vpop.f32.mrb[0].mxu0
        %v1039 = vadd.f32 %v946, %v1038
        %v1040 = vpop.f32.mrb[0].mxu0
        %v1041 = vpop.f32.mrb[0].mxu0
        %v1042 = vadd.f32 %v946, %v1041
        %v1043 = vpop.f32.mrb[0].mxu0
        %1044 = vmatprep.mubr.bf16.mxu0 0
        %1045 = vmatmul.mubr.bf16.gmra.mrb[0].mxu0 %v917
        %v1046 = vpop.f32.mrb[0].mxu0
        %v1047 = vadd.f32 %v946, %v1046
        %v1048 = vpop.f32.mrb[0].mxu0
        %v1049 = vpop.f32.mrb[0].mxu0
        %v1050 = vadd.f32 %v946, %v1049
        %v1051 = vpop.f32.mrb[0].mxu0
        %1052 = vmatprep.mubr.bf16.mxu0 0
        %1053 = vmatmul.mubr.bf16.gmra.mrb[0].mxu0 %v918
        %v1054 = vpop.f32.mrb[0].mxu0
        %v1055 = vadd.f32 %v946, %v1054
        %v1056 = vpop.f32.mrb[0].mxu0
        %v1057 = vpop.f32.mrb[0].mxu0
        %v1058 = vadd.f32 %v946, %v1057
        %v1059 = vpop.f32.mrb[0].mxu0
        %1060 = vmatprep.mubr.bf16.mxu0 0
        %1061 = vmatmul.mubr.bf16.gmra.mrb[0].mxu0 %v919
        %v1062 = vpop.f32.mrb[0].mxu0
        %v1063 = vadd.f32 %v946, %v1062
        %v1064 = vpop.f32.mrb[0].mxu0
        %v1065 = vpop.f32.mrb[0].mxu0
        %v1066 = vadd.f32 %v946, %v1065
        %v1067 = vpop.f32.mrb[0].mxu0
        %1068 = vmatprep.mubr.bf16.mxu0 0
        %1069 = vmatmul.mubr.bf16.gmra.mrb[0].mxu0 %v920
        %v1070 = vpop.f32.mrb[0].mxu0
        %v1071 = vadd.f32 %v946, %v1070
        %v1072 = vpop.f32.mrb[0].mxu0
        %v1073 = vpop.f32.mrb[0].mxu0
        %v1074 = vadd.f32 %v946, %v1073
        %v1075 = vpop.f32.mrb[0].mxu0
        %1076 = vmatprep.mubr.bf16.mxu0 0
        %1077 = vmatmul.mubr.bf16.gmra.mrb[0].mxu0 %v921
        %v1078 = vpop.f32.mrb[0].mxu0
        %v1079 = vadd.f32 %v946, %v1078
        %v1080 = vpop.f32.mrb[0].mxu0
        %v1081 = vpop.f32.mrb[0].mxu0
        %v1082 = vadd.f32 %v946, %v1081
        %v1083 = vpop.f32.mrb[0].mxu0
        %1084 = vmatprep.mubr.bf16.mxu0 0
        %1085 = vmatmul.mubr.bf16.gmra.mrb[0].mxu0 %v922
        %v1086 = vpop.f32.mrb[0].mxu0
        %v1087 = vadd.f32 %v946, %v1086
        %v1088 = vpop.f32.mrb[0].mxu0
        %v1089 = vpop.f32.mrb[0].mxu0
        %v1090 = vadd.f32 %v946, %v1089
        %v1091 = vpop.f32.mrb[0].mxu0
        %1092 = vdwg.mxu0
        %vm1093 = vcmp.gt.f32.partialorder %v1031, 0.0
        %vm1094 = vcmp.gt.f32.partialorder %v1034, 0.0
        %vm1095 = vcmp.gt.f32.partialorder %v1039, 0.0
        %vm1096 = vcmp.gt.f32.partialorder %v1042, 0.0
        %vm1097 = vcmp.gt.f32.partialorder %v1047, 0.0
        %vm1098 = vcmp.gt.f32.partialorder %v1050, 0.0
        %vm1099 = vcmp.gt.f32.partialorder %v1055, 0.0
        %vm1100 = vcmp.gt.f32.partialorder %v1058, 0.0
        %vm1101 = vcmp.gt.f32.partialorder %v1063, 0.0
        %vm1102 = vcmp.gt.f32.partialorder %v1066, 0.0
        %vm1103 = vcmp.gt.f32.partialorder %v1071, 0.0
        %vm1104 = vcmp.gt.f32.partialorder %v1074, 0.0
        %vm1105 = vcmp.gt.f32.partialorder %v1079, 0.0
        %vm1106 = vcmp.gt.f32.partialorder %v1082, 0.0
        %vm1107 = vcmp.gt.f32.partialorder %v1087, 0.0
        %vm1108 = vcmp.gt.f32.partialorder %v1090, 0.0
        %v1109 = vmul.f32 %v1031, 0.01
        %v1110 = vmul.f32 %v1034, 0.01
        %v1111 = vmul.f32 %v1039, 0.01
        %v1112 = vmul.f32 %v1042, 0.01
        %v1113 = vmul.f32 %v1047, 0.01
        %v1114 = vmul.f32 %v1050, 0.01
        %v1115 = vmul.f32 %v1055, 0.01
        %v1116 = vmul.f32 %v1058, 0.01
        %v1117 = vmul.f32 %v1063, 0.01
        %v1118 = vmul.f32 %v1066, 0.01
        %v1119 = vmul.f32 %v1071, 0.01
        %v1120 = vmul.f32 %v1074, 0.01
        %v1121 = vmul.f32 %v1079, 0.01
        %v1122 = vmul.f32 %v1082, 0.01
        %v1123 = vmul.f32 %v1087, 0.01
        %v1124 = vmul.f32 %v1090, 0.01
        %v1125 = vsel %vm1093, %v1031, %v1109
        %v1126 = vsel %vm1094, %v1034, %v1110
        %v1127 = vsel %vm1095, %v1039, %v1111
        %v1128 = vsel %vm1096, %v1042, %v1112
        %v1129 = vsel %vm1097, %v1047, %v1113
        %v1130 = vsel %vm1098, %v1050, %v1114
        %v1131 = vsel %vm1099, %v1055, %v1115
        %v1132 = vsel %vm1100, %v1058, %v1116
        %v1133 = vsel %vm1101, %v1063, %v1117
        %v1134 = vsel %vm1102, %v1066, %v1118
        %v1135 = vsel %vm1103, %v1071, %v1119
        %v1136 = vsel %vm1104, %v1074, %v1120
        %v1137 = vsel %vm1105, %v1079, %v1121
        %v1138 = vsel %vm1106, %v1082, %v1122
        %v1139 = vsel %vm1107, %v1087, %v1123
        %v1140 = vsel %vm1108, %v1090, %v1124
        %v1141 = vpack.c.bf16 %v1126, %v1125
        %v1142 = vpack.c.bf16 %v1128, %v1127
        %v1143 = vpack.c.bf16 %v1130, %v1129
        %v1144 = vpack.c.bf16 %v1132, %v1131
        %v1145 = vpack.c.bf16 %v1134, %v1133
        %v1146 = vpack.c.bf16 %v1136, %v1135
        %v1147 = vpack.c.bf16 %v1138, %v1137
        %v1148 = vpack.c.bf16 %v1140, %v1139
        %s1149 = scalar_lea.vmem [#allocation2], 192
        %v1150 = vld [vmem:[%s1149] sm:$0xf]
        %v1151 = vld [vmem:[%s1149 + $0x4] sm:$0xf]
        %v1152 = vld [vmem:[%s1149 + $0x8] sm:$0xf]
        %v1153 = vld [vmem:[%s1149 + $0xc] sm:$0xf]
        %v1154 = vld [vmem:[%s1149 + $0x10] sm:$0xf]
        %v1155 = vld [vmem:[%s1149 + $0x14] sm:$0xf]
        %v1156 = vld [vmem:[%s1149 + $0x18] sm:$0xf]
        %v1157 = vld [vmem:[%s1149 + $0x1c] sm:$0xf]
        %v1158 = vld [vmem:[%s1149 + $0x20] sm:$0xf]
        %v1159 = vld [vmem:[%s1149 + $0x24] sm:$0xf]
        %v1160 = vld [vmem:[%s1149 + $0x28] sm:$0xf]
        %v1161 = vld [vmem:[%s1149 + $0x2c] sm:$0xf]
        %v1162 = vld [vmem:[%s1149 + $0x30] sm:$0xf]
        %v1163 = vld [vmem:[%s1149 + $0x34] sm:$0xf]
        %v1164 = vld [vmem:[%s1149 + $0x38] sm:$0xf]
        %v1165 = vld [vmem:[%s1149 + $0x3c] sm:$0xf]
        %s1166 = scalar_lea.vmem %s3, 4
        %v1167 = vld [vmem:[%s1166] sm:$0x1]
        %v1169 = vlaneseq
        %v1170 = vshrl.u32 %v1169, 7
        %v1171 = vsub.s32 0, %v1170
        %v1172 = vrot.slane %v1167, %v1171
        %v1190 = vunpack.c.l.b16 %v1150
        %v1191 = vunpack.c.l.b16 %v1151
        %v1192 = vunpack.c.l.b16 %v1152
        %v1193 = vunpack.c.l.b16 %v1153
        %v1194 = vunpack.c.l.b16 %v1154
        %v1195 = vunpack.c.l.b16 %v1155
        %v1196 = vunpack.c.l.b16 %v1156
        %v1197 = vunpack.c.l.b16 %v1157
        %v1198 = vunpack.c.l.b16 %v1158
        %v1199 = vunpack.c.l.b16 %v1159
        %v1200 = vunpack.c.l.b16 %v1160
        %v1201 = vunpack.c.l.b16 %v1161
        %v1202 = vunpack.c.l.b16 %v1162
        %v1203 = vunpack.c.l.b16 %v1163
        %v1204 = vunpack.c.l.b16 %v1164
        %v1205 = vunpack.c.l.b16 %v1165
        %v1206 = vpack.c.b16 %v1191, %v1190
        %v1207 = vpack.c.b16 %v1193, %v1192
        %v1208 = vpack.c.b16 %v1195, %v1194
        %v1209 = vpack.c.b16 %v1197, %v1196
        %v1210 = vpack.c.b16 %v1199, %v1198
        %v1211 = vpack.c.b16 %v1201, %v1200
        %v1212 = vpack.c.b16 %v1203, %v1202
        %v1213 = vpack.c.b16 %v1205, %v1204
        %1222 = vmatprep.subr.bf16.mxu0 0
        %1223 = vmatpush1.bf16.msra.mxu0 %v1206
        %1224 = vmatprep.subr.bf16.mxu0 0
        %1225 = vmatpush1.bf16.msra.mxu0 %v1207
        %1226 = vmatprep.subr.bf16.mxu0 0
        %1227 = vmatpush1.bf16.msra.mxu0 %v1208
        %1228 = vmatprep.subr.bf16.mxu0 0
        %1229 = vmatpush1.bf16.msra.mxu0 %v1209
        %1230 = vmatprep.subr.bf16.mxu0 0
        %1231 = vmatpush1.bf16.msra.mxu0 %v1210
        %1232 = vmatprep.subr.bf16.mxu0 0
        %1233 = vmatpush1.bf16.msra.mxu0 %v1211
        %1234 = vmatprep.subr.bf16.mxu0 0
        %1235 = vmatpush1.bf16.msra.mxu0 %v1212
        %1236 = vmatprep.subr.bf16.mxu0 0
        %1237 = vmatpush1.bf16.msra.mxu0 %v1213
        %1238 = vmatprep.subr.bf16.mxu0 0
        %1239 = vmatpush1.bf16.msra.mxu0 0
        %1240 = vmatprep.subr.bf16.mxu0 0
        %1241 = vmatpush1.bf16.msra.mxu0 0
        %1242 = vmatprep.subr.bf16.mxu0 0
        %1243 = vmatpush1.bf16.msra.mxu0 0
        %1244 = vmatprep.subr.bf16.mxu0 0
        %1245 = vmatpush1.bf16.msra.mxu0 0
        %1246 = vmatprep.subr.bf16.mxu0 0
        %1247 = vmatpush1.bf16.msra.mxu0 0
        %1248 = vmatprep.subr.bf16.mxu0 0
        %1249 = vmatpush1.bf16.msra.mxu0 0
        %1250 = vmatprep.subr.bf16.mxu0 0
        %1251 = vmatpush1.bf16.msra.mxu0 0
        %1252 = vmatprep.subr.bf16.mxu0 0
        %1253 = vmatpush1.bf16.msra.mxu0 0
        %1254 = vmatprep.mubr.bf16.mxu0 0
        %1255 = vmatmul.mubr.bf16.gmra.mrb[0].mxu0 %v1141
        %v1256 = vpop.f32.mrb[0].mxu0
        %v1257 = vadd.f32 %v1172, %v1256
        %v1258 = vpop.f32.mrb[0].mxu0
        %v1259 = vpop.f32.mrb[0].mxu0
        %v1260 = vadd.f32 %v1172, %v1259
        %v1261 = vpop.f32.mrb[0].mxu0
        %1262 = vmatprep.mubr.bf16.mxu0 0
        %1263 = vmatmul.mubr.bf16.gmra.mrb[0].mxu0 %v1142
        %v1264 = vpop.f32.mrb[0].mxu0
        %v1265 = vadd.f32 %v1172, %v1264
        %v1266 = vpop.f32.mrb[0].mxu0
        %v1267 = vpop.f32.mrb[0].mxu0
        %v1268 = vadd.f32 %v1172, %v1267
        %v1269 = vpop.f32.mrb[0].mxu0
        %1270 = vmatprep.mubr.bf16.mxu0 0
        %1271 = vmatmul.mubr.bf16.gmra.mrb[0].mxu0 %v1143
        %v1272 = vpop.f32.mrb[0].mxu0
        %v1273 = vadd.f32 %v1172, %v1272
        %v1274 = vpop.f32.mrb[0].mxu0
        %v1275 = vpop.f32.mrb[0].mxu0
        %v1276 = vadd.f32 %v1172, %v1275
        %v1277 = vpop.f32.mrb[0].mxu0
        %1278 = vmatprep.mubr.bf16.mxu0 0
        %1279 = vmatmul.mubr.bf16.gmra.mrb[0].mxu0 %v1144
        %v1280 = vpop.f32.mrb[0].mxu0
        %v1281 = vadd.f32 %v1172, %v1280
        %v1282 = vpop.f32.mrb[0].mxu0
        %v1283 = vpop.f32.mrb[0].mxu0
        %v1284 = vadd.f32 %v1172, %v1283
        %v1285 = vpop.f32.mrb[0].mxu0
        %1286 = vmatprep.mubr.bf16.mxu0 0
        %1287 = vmatmul.mubr.bf16.gmra.mrb[0].mxu0 %v1145
        %v1288 = vpop.f32.mrb[0].mxu0
        %v1289 = vadd.f32 %v1172, %v1288
        %v1290 = vpop.f32.mrb[0].mxu0
        %v1291 = vpop.f32.mrb[0].mxu0
        %v1292 = vadd.f32 %v1172, %v1291
        %v1293 = vpop.f32.mrb[0].mxu0
        %1294 = vmatprep.mubr.bf16.mxu0 0
        %1295 = vmatmul.mubr.bf16.gmra.mrb[0].mxu0 %v1146
        %v1296 = vpop.f32.mrb[0].mxu0
        %v1297 = vadd.f32 %v1172, %v1296
        %v1298 = vpop.f32.mrb[0].mxu0
        %v1299 = vpop.f32.mrb[0].mxu0
        %v1300 = vadd.f32 %v1172, %v1299
        %v1301 = vpop.f32.mrb[0].mxu0
        %1302 = vmatprep.mubr.bf16.mxu0 0
        %1303 = vmatmul.mubr.bf16.gmra.mrb[0].mxu0 %v1147
        %v1304 = vpop.f32.mrb[0].mxu0
        %v1305 = vadd.f32 %v1172, %v1304
        %v1306 = vpop.f32.mrb[0].mxu0
        %v1307 = vpop.f32.mrb[0].mxu0
        %v1308 = vadd.f32 %v1172, %v1307
        %v1309 = vpop.f32.mrb[0].mxu0
        %1310 = vmatprep.mubr.bf16.mxu0 0
        %1311 = vmatmul.mubr.bf16.gmra.mrb[0].mxu0 %v1148
        %v1312 = vpop.f32.mrb[0].mxu0
        %v1313 = vadd.f32 %v1172, %v1312
        %v1314 = vpop.f32.mrb[0].mxu0
        %v1315 = vpop.f32.mrb[0].mxu0
        %v1316 = vadd.f32 %v1172, %v1315
        %v1317 = vpop.f32.mrb[0].mxu0
        %1318 = vdwg.mxu0
        %vm1319 = vcmp.gt.f32.partialorder %v1257, 0.0
        %vm1320 = vcmp.gt.f32.partialorder %v1260, 0.0
        %vm1321 = vcmp.gt.f32.partialorder %v1265, 0.0
        %vm1322 = vcmp.gt.f32.partialorder %v1268, 0.0
        %vm1323 = vcmp.gt.f32.partialorder %v1273, 0.0
        %vm1324 = vcmp.gt.f32.partialorder %v1276, 0.0
        %vm1325 = vcmp.gt.f32.partialorder %v1281, 0.0
        %vm1326 = vcmp.gt.f32.partialorder %v1284, 0.0
        %vm1327 = vcmp.gt.f32.partialorder %v1289, 0.0
        %vm1328 = vcmp.gt.f32.partialorder %v1292, 0.0
        %vm1329 = vcmp.gt.f32.partialorder %v1297, 0.0
        %vm1330 = vcmp.gt.f32.partialorder %v1300, 0.0
        %vm1331 = vcmp.gt.f32.partialorder %v1305, 0.0
        %vm1332 = vcmp.gt.f32.partialorder %v1308, 0.0
        %vm1333 = vcmp.gt.f32.partialorder %v1313, 0.0
        %vm1334 = vcmp.gt.f32.partialorder %v1316, 0.0
        %v1335 = vmul.f32 %v1257, 0.01
        %v1336 = vmul.f32 %v1260, 0.01
        %v1337 = vmul.f32 %v1265, 0.01
        %v1338 = vmul.f32 %v1268, 0.01
        %v1339 = vmul.f32 %v1273, 0.01
        %v1340 = vmul.f32 %v1276, 0.01
        %v1341 = vmul.f32 %v1281, 0.01
        %v1342 = vmul.f32 %v1284, 0.01
        %v1343 = vmul.f32 %v1289, 0.01
        %v1344 = vmul.f32 %v1292, 0.01
        %v1345 = vmul.f32 %v1297, 0.01
        %v1346 = vmul.f32 %v1300, 0.01
        %v1347 = vmul.f32 %v1305, 0.01
        %v1348 = vmul.f32 %v1308, 0.01
        %v1349 = vmul.f32 %v1313, 0.01
        %v1350 = vmul.f32 %v1316, 0.01
        %v1351 = vsel %vm1319, %v1257, %v1335
        %v1352 = vsel %vm1320, %v1260, %v1336
        %v1353 = vsel %vm1321, %v1265, %v1337
        %v1354 = vsel %vm1322, %v1268, %v1338
        %v1355 = vsel %vm1323, %v1273, %v1339
        %v1356 = vsel %vm1324, %v1276, %v1340
        %v1357 = vsel %vm1325, %v1281, %v1341
        %v1358 = vsel %vm1326, %v1284, %v1342
        %v1359 = vsel %vm1327, %v1289, %v1343
        %v1360 = vsel %vm1328, %v1292, %v1344
        %v1361 = vsel %vm1329, %v1297, %v1345
        %v1362 = vsel %vm1330, %v1300, %v1346
        %v1363 = vsel %vm1331, %v1305, %v1347
        %v1364 = vsel %vm1332, %v1308, %v1348
        %v1365 = vsel %vm1333, %v1313, %v1349
        %v1366 = vsel %vm1334, %v1316, %v1350
        %v1367 = vpack.c.bf16 %v1352, %v1351
        %v1368 = vpack.c.bf16 %v1354, %v1353
        %v1369 = vpack.c.bf16 %v1356, %v1355
        %v1370 = vpack.c.bf16 %v1358, %v1357
        %v1371 = vpack.c.bf16 %v1360, %v1359
        %v1372 = vpack.c.bf16 %v1362, %v1361
        %v1373 = vpack.c.bf16 %v1364, %v1363
        %v1374 = vpack.c.bf16 %v1366, %v1365
        %s1375 = scalar_lea.vmem [#allocation2], 256
        %v1376 = vld [vmem:[%s1375] sm:$0xf]
        %v1377 = vld [vmem:[%s1375 + $0x4] sm:$0xf]
        %v1378 = vld [vmem:[%s1375 + $0x8] sm:$0xf]
        %v1379 = vld [vmem:[%s1375 + $0xc] sm:$0xf]
        %v1380 = vld [vmem:[%s1375 + $0x10] sm:$0xf]
        %v1381 = vld [vmem:[%s1375 + $0x14] sm:$0xf]
        %v1382 = vld [vmem:[%s1375 + $0x18] sm:$0xf]
        %v1383 = vld [vmem:[%s1375 + $0x1c] sm:$0xf]
        %v1384 = vld [vmem:[%s1375 + $0x20] sm:$0xf]
        %v1385 = vld [vmem:[%s1375 + $0x24] sm:$0xf]
        %v1386 = vld [vmem:[%s1375 + $0x28] sm:$0xf]
        %v1387 = vld [vmem:[%s1375 + $0x2c] sm:$0xf]
        %v1388 = vld [vmem:[%s1375 + $0x30] sm:$0xf]
        %v1389 = vld [vmem:[%s1375 + $0x34] sm:$0xf]
        %v1390 = vld [vmem:[%s1375 + $0x38] sm:$0xf]
        %v1391 = vld [vmem:[%s1375 + $0x3c] sm:$0xf]
        %s1392 = scalar_lea.vmem %s3, 5
        %v1393 = vld [vmem:[%s1392] sm:$0x1]
        %v1395 = vlaneseq
        %v1396 = vshrl.u32 %v1395, 7
        %v1397 = vsub.s32 0, %v1396
        %v1398 = vrot.slane %v1393, %v1397
        %v1416 = vunpack.c.l.b16 %v1376
        %v1417 = vunpack.c.l.b16 %v1377
        %v1418 = vunpack.c.l.b16 %v1378
        %v1419 = vunpack.c.l.b16 %v1379
        %v1420 = vunpack.c.l.b16 %v1380
        %v1421 = vunpack.c.l.b16 %v1381
        %v1422 = vunpack.c.l.b16 %v1382
        %v1423 = vunpack.c.l.b16 %v1383
        %v1424 = vunpack.c.l.b16 %v1384
        %v1425 = vunpack.c.l.b16 %v1385
        %v1426 = vunpack.c.l.b16 %v1386
        %v1427 = vunpack.c.l.b16 %v1387
        %v1428 = vunpack.c.l.b16 %v1388
        %v1429 = vunpack.c.l.b16 %v1389
        %v1430 = vunpack.c.l.b16 %v1390
        %v1431 = vunpack.c.l.b16 %v1391
        %v1432 = vpack.c.b16 %v1417, %v1416
        %v1433 = vpack.c.b16 %v1419, %v1418
        %v1434 = vpack.c.b16 %v1421, %v1420
        %v1435 = vpack.c.b16 %v1423, %v1422
        %v1436 = vpack.c.b16 %v1425, %v1424
        %v1437 = vpack.c.b16 %v1427, %v1426
        %v1438 = vpack.c.b16 %v1429, %v1428
        %v1439 = vpack.c.b16 %v1431, %v1430
        %1448 = vmatprep.subr.bf16.mxu0 0
        %1449 = vmatpush1.bf16.msra.mxu0 %v1432
        %1450 = vmatprep.subr.bf16.mxu0 0
        %1451 = vmatpush1.bf16.msra.mxu0 %v1433
        %1452 = vmatprep.subr.bf16.mxu0 0
        %1453 = vmatpush1.bf16.msra.mxu0 %v1434
        %1454 = vmatprep.subr.bf16.mxu0 0
        %1455 = vmatpush1.bf16.msra.mxu0 %v1435
        %1456 = vmatprep.subr.bf16.mxu0 0
        %1457 = vmatpush1.bf16.msra.mxu0 %v1436
        %1458 = vmatprep.subr.bf16.mxu0 0
        %1459 = vmatpush1.bf16.msra.mxu0 %v1437
        %1460 = vmatprep.subr.bf16.mxu0 0
        %1461 = vmatpush1.bf16.msra.mxu0 %v1438
        %1462 = vmatprep.subr.bf16.mxu0 0
        %1463 = vmatpush1.bf16.msra.mxu0 %v1439
        %1464 = vmatprep.subr.bf16.mxu0 0
        %1465 = vmatpush1.bf16.msra.mxu0 0
        %1466 = vmatprep.subr.bf16.mxu0 0
        %1467 = vmatpush1.bf16.msra.mxu0 0
        %1468 = vmatprep.subr.bf16.mxu0 0
        %1469 = vmatpush1.bf16.msra.mxu0 0
        %1470 = vmatprep.subr.bf16.mxu0 0
        %1471 = vmatpush1.bf16.msra.mxu0 0
        %1472 = vmatprep.subr.bf16.mxu0 0
        %1473 = vmatpush1.bf16.msra.mxu0 0
        %1474 = vmatprep.subr.bf16.mxu0 0
        %1475 = vmatpush1.bf16.msra.mxu0 0
        %1476 = vmatprep.subr.bf16.mxu0 0
        %1477 = vmatpush1.bf16.msra.mxu0 0
        %1478 = vmatprep.subr.bf16.mxu0 0
        %1479 = vmatpush1.bf16.msra.mxu0 0
        %1480 = vmatprep.mubr.bf16.mxu0 0
        %1481 = vmatmul.mubr.bf16.gmra.mrb[0].mxu0 %v1367
        %v1482 = vpop.f32.mrb[0].mxu0
        %v1483 = vadd.f32 %v1398, %v1482
        %v1484 = vpop.f32.mrb[0].mxu0
        %v1485 = vpop.f32.mrb[0].mxu0
        %v1486 = vadd.f32 %v1398, %v1485
        %v1487 = vpop.f32.mrb[0].mxu0
        %1488 = vmatprep.mubr.bf16.mxu0 0
        %1489 = vmatmul.mubr.bf16.gmra.mrb[0].mxu0 %v1368
        %v1490 = vpop.f32.mrb[0].mxu0
        %v1491 = vadd.f32 %v1398, %v1490
        %v1492 = vpop.f32.mrb[0].mxu0
        %v1493 = vpop.f32.mrb[0].mxu0
        %v1494 = vadd.f32 %v1398, %v1493
        %v1495 = vpop.f32.mrb[0].mxu0
        %1496 = vmatprep.mubr.bf16.mxu0 0
        %1497 = vmatmul.mubr.bf16.gmra.mrb[0].mxu0 %v1369
        %v1498 = vpop.f32.mrb[0].mxu0
        %v1499 = vadd.f32 %v1398, %v1498
        %v1500 = vpop.f32.mrb[0].mxu0
        %v1501 = vpop.f32.mrb[0].mxu0
        %v1502 = vadd.f32 %v1398, %v1501
        %v1503 = vpop.f32.mrb[0].mxu0
        %1504 = vmatprep.mubr.bf16.mxu0 0
        %1505 = vmatmul.mubr.bf16.gmra.mrb[0].mxu0 %v1370
        %v1506 = vpop.f32.mrb[0].mxu0
        %v1507 = vadd.f32 %v1398, %v1506
        %v1508 = vpop.f32.mrb[0].mxu0
        %v1509 = vpop.f32.mrb[0].mxu0
        %v1510 = vadd.f32 %v1398, %v1509
        %v1511 = vpop.f32.mrb[0].mxu0
        %1512 = vmatprep.mubr.bf16.mxu0 0
        %1513 = vmatmul.mubr.bf16.gmra.mrb[0].mxu0 %v1371
        %v1514 = vpop.f32.mrb[0].mxu0
        %v1515 = vadd.f32 %v1398, %v1514
        %v1516 = vpop.f32.mrb[0].mxu0
        %v1517 = vpop.f32.mrb[0].mxu0
        %v1518 = vadd.f32 %v1398, %v1517
        %v1519 = vpop.f32.mrb[0].mxu0
        %1520 = vmatprep.mubr.bf16.mxu0 0
        %1521 = vmatmul.mubr.bf16.gmra.mrb[0].mxu0 %v1372
        %v1522 = vpop.f32.mrb[0].mxu0
        %v1523 = vadd.f32 %v1398, %v1522
        %v1524 = vpop.f32.mrb[0].mxu0
        %v1525 = vpop.f32.mrb[0].mxu0
        %v1526 = vadd.f32 %v1398, %v1525
        %v1527 = vpop.f32.mrb[0].mxu0
        %1528 = vmatprep.mubr.bf16.mxu0 0
        %1529 = vmatmul.mubr.bf16.gmra.mrb[0].mxu0 %v1373
        %v1530 = vpop.f32.mrb[0].mxu0
        %v1531 = vadd.f32 %v1398, %v1530
        %v1532 = vpop.f32.mrb[0].mxu0
        %v1533 = vpop.f32.mrb[0].mxu0
        %v1534 = vadd.f32 %v1398, %v1533
        %v1535 = vpop.f32.mrb[0].mxu0
        %1536 = vmatprep.mubr.bf16.mxu0 0
        %1537 = vmatmul.mubr.bf16.gmra.mrb[0].mxu0 %v1374
        %v1538 = vpop.f32.mrb[0].mxu0
        %v1539 = vadd.f32 %v1398, %v1538
        %v1540 = vpop.f32.mrb[0].mxu0
        %v1541 = vpop.f32.mrb[0].mxu0
        %v1542 = vadd.f32 %v1398, %v1541
        %v1543 = vpop.f32.mrb[0].mxu0
        %1544 = vdwg.mxu0
        %vm1545 = vcmp.gt.f32.partialorder %v1483, 0.0
        %vm1546 = vcmp.gt.f32.partialorder %v1486, 0.0
        %vm1547 = vcmp.gt.f32.partialorder %v1491, 0.0
        %vm1548 = vcmp.gt.f32.partialorder %v1494, 0.0
        %vm1549 = vcmp.gt.f32.partialorder %v1499, 0.0
        %vm1550 = vcmp.gt.f32.partialorder %v1502, 0.0
        %vm1551 = vcmp.gt.f32.partialorder %v1507, 0.0
        %vm1552 = vcmp.gt.f32.partialorder %v1510, 0.0
        %vm1553 = vcmp.gt.f32.partialorder %v1515, 0.0
        %vm1554 = vcmp.gt.f32.partialorder %v1518, 0.0
        %vm1555 = vcmp.gt.f32.partialorder %v1523, 0.0
        %vm1556 = vcmp.gt.f32.partialorder %v1526, 0.0
        %vm1557 = vcmp.gt.f32.partialorder %v1531, 0.0
        %vm1558 = vcmp.gt.f32.partialorder %v1534, 0.0
        %vm1559 = vcmp.gt.f32.partialorder %v1539, 0.0
        %vm1560 = vcmp.gt.f32.partialorder %v1542, 0.0
        %v1561 = vmul.f32 %v1483, 0.01
        %v1562 = vmul.f32 %v1486, 0.01
        %v1563 = vmul.f32 %v1491, 0.01
        %v1564 = vmul.f32 %v1494, 0.01
        %v1565 = vmul.f32 %v1499, 0.01
        %v1566 = vmul.f32 %v1502, 0.01
        %v1567 = vmul.f32 %v1507, 0.01
        %v1568 = vmul.f32 %v1510, 0.01
        %v1569 = vmul.f32 %v1515, 0.01
        %v1570 = vmul.f32 %v1518, 0.01
        %v1571 = vmul.f32 %v1523, 0.01
        %v1572 = vmul.f32 %v1526, 0.01
        %v1573 = vmul.f32 %v1531, 0.01
        %v1574 = vmul.f32 %v1534, 0.01
        %v1575 = vmul.f32 %v1539, 0.01
        %v1576 = vmul.f32 %v1542, 0.01
        %v1577 = vsel %vm1545, %v1483, %v1561
        %v1578 = vsel %vm1546, %v1486, %v1562
        %v1579 = vsel %vm1547, %v1491, %v1563
        %v1580 = vsel %vm1548, %v1494, %v1564
        %v1581 = vsel %vm1549, %v1499, %v1565
        %v1582 = vsel %vm1550, %v1502, %v1566
        %v1583 = vsel %vm1551, %v1507, %v1567
        %v1584 = vsel %vm1552, %v1510, %v1568
        %v1585 = vsel %vm1553, %v1515, %v1569
        %v1586 = vsel %vm1554, %v1518, %v1570
        %v1587 = vsel %vm1555, %v1523, %v1571
        %v1588 = vsel %vm1556, %v1526, %v1572
        %v1589 = vsel %vm1557, %v1531, %v1573
        %v1590 = vsel %vm1558, %v1534, %v1574
        %v1591 = vsel %vm1559, %v1539, %v1575
        %v1592 = vsel %vm1560, %v1542, %v1576
        %v1593 = vpack.c.bf16 %v1578, %v1577
        %v1594 = vpack.c.bf16 %v1580, %v1579
        %v1595 = vpack.c.bf16 %v1582, %v1581
        %v1596 = vpack.c.bf16 %v1584, %v1583
        %v1597 = vpack.c.bf16 %v1586, %v1585
        %v1598 = vpack.c.bf16 %v1588, %v1587
        %v1599 = vpack.c.bf16 %v1590, %v1589
        %v1600 = vpack.c.bf16 %v1592, %v1591
        %s1601 = scalar_lea.vmem [#allocation2], 320
        %v1602 = vld [vmem:[%s1601] sm:$0xf]
        %v1603 = vld [vmem:[%s1601 + $0x4] sm:$0xf]
        %v1604 = vld [vmem:[%s1601 + $0x8] sm:$0xf]
        %v1605 = vld [vmem:[%s1601 + $0xc] sm:$0xf]
        %v1606 = vld [vmem:[%s1601 + $0x10] sm:$0xf]
        %v1607 = vld [vmem:[%s1601 + $0x14] sm:$0xf]
        %v1608 = vld [vmem:[%s1601 + $0x18] sm:$0xf]
        %v1609 = vld [vmem:[%s1601 + $0x1c] sm:$0xf]
        %v1610 = vld [vmem:[%s1601 + $0x20] sm:$0xf]
        %v1611 = vld [vmem:[%s1601 + $0x24] sm:$0xf]
        %v1612 = vld [vmem:[%s1601 + $0x28] sm:$0xf]
        %v1613 = vld [vmem:[%s1601 + $0x2c] sm:$0xf]
        %v1614 = vld [vmem:[%s1601 + $0x30] sm:$0xf]
        %v1615 = vld [vmem:[%s1601 + $0x34] sm:$0xf]
        %v1616 = vld [vmem:[%s1601 + $0x38] sm:$0xf]
        %v1617 = vld [vmem:[%s1601 + $0x3c] sm:$0xf]
        %s1618 = scalar_lea.vmem %s3, 6
        %v1619 = vld [vmem:[%s1618] sm:$0x1]
        %v1621 = vlaneseq
        %v1622 = vshrl.u32 %v1621, 7
        %v1623 = vsub.s32 0, %v1622
        %v1624 = vrot.slane %v1619, %v1623
        %v1642 = vunpack.c.l.b16 %v1602
        %v1643 = vunpack.c.l.b16 %v1603
        %v1644 = vunpack.c.l.b16 %v1604
        %v1645 = vunpack.c.l.b16 %v1605
        %v1646 = vunpack.c.l.b16 %v1606
        %v1647 = vunpack.c.l.b16 %v1607
        %v1648 = vunpack.c.l.b16 %v1608
        %v1649 = vunpack.c.l.b16 %v1609
        %v1650 = vunpack.c.l.b16 %v1610
        %v1651 = vunpack.c.l.b16 %v1611
        %v1652 = vunpack.c.l.b16 %v1612
        %v1653 = vunpack.c.l.b16 %v1613
        %v1654 = vunpack.c.l.b16 %v1614
        %v1655 = vunpack.c.l.b16 %v1615
        %v1656 = vunpack.c.l.b16 %v1616
        %v1657 = vunpack.c.l.b16 %v1617
        %v1658 = vpack.c.b16 %v1643, %v1642
        %v1659 = vpack.c.b16 %v1645, %v1644
        %v1660 = vpack.c.b16 %v1647, %v1646
        %v1661 = vpack.c.b16 %v1649, %v1648
        %v1662 = vpack.c.b16 %v1651, %v1650
        %v1663 = vpack.c.b16 %v1653, %v1652
        %v1664 = vpack.c.b16 %v1655, %v1654
        %v1665 = vpack.c.b16 %v1657, %v1656
        %1674 = vmatprep.subr.bf16.mxu0 0
        %1675 = vmatpush1.bf16.msra.mxu0 %v1658
        %1676 = vmatprep.subr.bf16.mxu0 0
        %1677 = vmatpush1.bf16.msra.mxu0 %v1659
        %1678 = vmatprep.subr.bf16.mxu0 0
        %1679 = vmatpush1.bf16.msra.mxu0 %v1660
        %1680 = vmatprep.subr.bf16.mxu0 0
        %1681 = vmatpush1.bf16.msra.mxu0 %v1661
        %1682 = vmatprep.subr.bf16.mxu0 0
        %1683 = vmatpush1.bf16.msra.mxu0 %v1662
        %1684 = vmatprep.subr.bf16.mxu0 0
        %1685 = vmatpush1.bf16.msra.mxu0 %v1663
        %1686 = vmatprep.subr.bf16.mxu0 0
        %1687 = vmatpush1.bf16.msra.mxu0 %v1664
        %1688 = vmatprep.subr.bf16.mxu0 0
        %1689 = vmatpush1.bf16.msra.mxu0 %v1665
        %1690 = vmatprep.subr.bf16.mxu0 0
        %1691 = vmatpush1.bf16.msra.mxu0 0
        %1692 = vmatprep.subr.bf16.mxu0 0
        %1693 = vmatpush1.bf16.msra.mxu0 0
        %1694 = vmatprep.subr.bf16.mxu0 0
        %1695 = vmatpush1.bf16.msra.mxu0 0
        %1696 = vmatprep.subr.bf16.mxu0 0
        %1697 = vmatpush1.bf16.msra.mxu0 0
        %1698 = vmatprep.subr.bf16.mxu0 0
        %1699 = vmatpush1.bf16.msra.mxu0 0
        %1700 = vmatprep.subr.bf16.mxu0 0
        %1701 = vmatpush1.bf16.msra.mxu0 0
        %1702 = vmatprep.subr.bf16.mxu0 0
        %1703 = vmatpush1.bf16.msra.mxu0 0
        %1704 = vmatprep.subr.bf16.mxu0 0
        %1705 = vmatpush1.bf16.msra.mxu0 0
        %1706 = vmatprep.mubr.bf16.mxu0 0
        %1707 = vmatmul.mubr.bf16.gmra.mrb[0].mxu0 %v1593
        %v1708 = vpop.f32.mrb[0].mxu0
        %v1709 = vadd.f32 %v1624, %v1708
        %v1710 = vpop.f32.mrb[0].mxu0
        %v1711 = vpop.f32.mrb[0].mxu0
        %v1712 = vadd.f32 %v1624, %v1711
        %v1713 = vpop.f32.mrb[0].mxu0
        %1714 = vmatprep.mubr.bf16.mxu0 0
        %1715 = vmatmul.mubr.bf16.gmra.mrb[0].mxu0 %v1594
        %v1716 = vpop.f32.mrb[0].mxu0
        %v1717 = vadd.f32 %v1624, %v1716
        %v1718 = vpop.f32.mrb[0].mxu0
        %v1719 = vpop.f32.mrb[0].mxu0
        %v1720 = vadd.f32 %v1624, %v1719
        %v1721 = vpop.f32.mrb[0].mxu0
        %1722 = vmatprep.mubr.bf16.mxu0 0
        %1723 = vmatmul.mubr.bf16.gmra.mrb[0].mxu0 %v1595
        %v1724 = vpop.f32.mrb[0].mxu0
        %v1725 = vadd.f32 %v1624, %v1724
        %v1726 = vpop.f32.mrb[0].mxu0
        %v1727 = vpop.f32.mrb[0].mxu0
        %v1728 = vadd.f32 %v1624, %v1727
        %v1729 = vpop.f32.mrb[0].mxu0
        %1730 = vmatprep.mubr.bf16.mxu0 0
        %1731 = vmatmul.mubr.bf16.gmra.mrb[0].mxu0 %v1596
        %v1732 = vpop.f32.mrb[0].mxu0
        %v1733 = vadd.f32 %v1624, %v1732
        %v1734 = vpop.f32.mrb[0].mxu0
        %v1735 = vpop.f32.mrb[0].mxu0
        %v1736 = vadd.f32 %v1624, %v1735
        %v1737 = vpop.f32.mrb[0].mxu0
        %1738 = vmatprep.mubr.bf16.mxu0 0
        %1739 = vmatmul.mubr.bf16.gmra.mrb[0].mxu0 %v1597
        %v1740 = vpop.f32.mrb[0].mxu0
        %v1741 = vadd.f32 %v1624, %v1740
        %v1742 = vpop.f32.mrb[0].mxu0
        %v1743 = vpop.f32.mrb[0].mxu0
        %v1744 = vadd.f32 %v1624, %v1743
        %v1745 = vpop.f32.mrb[0].mxu0
        %1746 = vmatprep.mubr.bf16.mxu0 0
        %1747 = vmatmul.mubr.bf16.gmra.mrb[0].mxu0 %v1598
        %v1748 = vpop.f32.mrb[0].mxu0
        %v1749 = vadd.f32 %v1624, %v1748
        %v1750 = vpop.f32.mrb[0].mxu0
        %v1751 = vpop.f32.mrb[0].mxu0
        %v1752 = vadd.f32 %v1624, %v1751
        %v1753 = vpop.f32.mrb[0].mxu0
        %1754 = vmatprep.mubr.bf16.mxu0 0
        %1755 = vmatmul.mubr.bf16.gmra.mrb[0].mxu0 %v1599
        %v1756 = vpop.f32.mrb[0].mxu0
        %v1757 = vadd.f32 %v1624, %v1756
        %v1758 = vpop.f32.mrb[0].mxu0
        %v1759 = vpop.f32.mrb[0].mxu0
        %v1760 = vadd.f32 %v1624, %v1759
        %v1761 = vpop.f32.mrb[0].mxu0
        %1762 = vmatprep.mubr.bf16.mxu0 0
        %1763 = vmatmul.mubr.bf16.gmra.mrb[0].mxu0 %v1600
        %v1764 = vpop.f32.mrb[0].mxu0
        %v1765 = vadd.f32 %v1624, %v1764
        %v1766 = vpop.f32.mrb[0].mxu0
        %v1767 = vpop.f32.mrb[0].mxu0
        %v1768 = vadd.f32 %v1624, %v1767
        %v1769 = vpop.f32.mrb[0].mxu0
        %1770 = vdwg.mxu0
        %vm1771 = vcmp.gt.f32.partialorder %v1709, 0.0
        %vm1772 = vcmp.gt.f32.partialorder %v1712, 0.0
        %vm1773 = vcmp.gt.f32.partialorder %v1717, 0.0
        %vm1774 = vcmp.gt.f32.partialorder %v1720, 0.0
        %vm1775 = vcmp.gt.f32.partialorder %v1725, 0.0
        %vm1776 = vcmp.gt.f32.partialorder %v1728, 0.0
        %vm1777 = vcmp.gt.f32.partialorder %v1733, 0.0
        %vm1778 = vcmp.gt.f32.partialorder %v1736, 0.0
        %vm1779 = vcmp.gt.f32.partialorder %v1741, 0.0
        %vm1780 = vcmp.gt.f32.partialorder %v1744, 0.0
        %vm1781 = vcmp.gt.f32.partialorder %v1749, 0.0
        %vm1782 = vcmp.gt.f32.partialorder %v1752, 0.0
        %vm1783 = vcmp.gt.f32.partialorder %v1757, 0.0
        %vm1784 = vcmp.gt.f32.partialorder %v1760, 0.0
        %vm1785 = vcmp.gt.f32.partialorder %v1765, 0.0
        %vm1786 = vcmp.gt.f32.partialorder %v1768, 0.0
        %v1787 = vmul.f32 %v1709, 0.01
        %v1788 = vmul.f32 %v1712, 0.01
        %v1789 = vmul.f32 %v1717, 0.01
        %v1790 = vmul.f32 %v1720, 0.01
        %v1791 = vmul.f32 %v1725, 0.01
        %v1792 = vmul.f32 %v1728, 0.01
        %v1793 = vmul.f32 %v1733, 0.01
        %v1794 = vmul.f32 %v1736, 0.01
        %v1795 = vmul.f32 %v1741, 0.01
        %v1796 = vmul.f32 %v1744, 0.01
        %v1797 = vmul.f32 %v1749, 0.01
        %v1798 = vmul.f32 %v1752, 0.01
        %v1799 = vmul.f32 %v1757, 0.01
        %v1800 = vmul.f32 %v1760, 0.01
        %v1801 = vmul.f32 %v1765, 0.01
        %v1802 = vmul.f32 %v1768, 0.01
        %v1803 = vsel %vm1771, %v1709, %v1787
        %v1804 = vsel %vm1772, %v1712, %v1788
        %v1805 = vsel %vm1773, %v1717, %v1789
        %v1806 = vsel %vm1774, %v1720, %v1790
        %v1807 = vsel %vm1775, %v1725, %v1791
        %v1808 = vsel %vm1776, %v1728, %v1792
        %v1809 = vsel %vm1777, %v1733, %v1793
        %v1810 = vsel %vm1778, %v1736, %v1794
        %v1811 = vsel %vm1779, %v1741, %v1795
        %v1812 = vsel %vm1780, %v1744, %v1796
        %v1813 = vsel %vm1781, %v1749, %v1797
        %v1814 = vsel %vm1782, %v1752, %v1798
        %v1815 = vsel %vm1783, %v1757, %v1799
        %v1816 = vsel %vm1784, %v1760, %v1800
        %v1817 = vsel %vm1785, %v1765, %v1801
        %v1818 = vsel %vm1786, %v1768, %v1802
        %v1819 = vpack.c.bf16 %v1804, %v1803
        %v1820 = vpack.c.bf16 %v1806, %v1805
        %v1821 = vpack.c.bf16 %v1808, %v1807
        %v1822 = vpack.c.bf16 %v1810, %v1809
        %v1823 = vpack.c.bf16 %v1812, %v1811
        %v1824 = vpack.c.bf16 %v1814, %v1813
        %v1825 = vpack.c.bf16 %v1816, %v1815
        %v1826 = vpack.c.bf16 %v1818, %v1817
        %s1827 = scalar_lea.vmem [#allocation2], 384
        %v1828 = vld [vmem:[%s1827] sm:$0xf]
        %v1829 = vld [vmem:[%s1827 + $0x4] sm:$0xf]
        %v1830 = vld [vmem:[%s1827 + $0x8] sm:$0xf]
        %v1831 = vld [vmem:[%s1827 + $0xc] sm:$0xf]
        %v1832 = vld [vmem:[%s1827 + $0x10] sm:$0xf]
        %v1833 = vld [vmem:[%s1827 + $0x14] sm:$0xf]
        %v1834 = vld [vmem:[%s1827 + $0x18] sm:$0xf]
        %v1835 = vld [vmem:[%s1827 + $0x1c] sm:$0xf]
        %v1836 = vld [vmem:[%s1827 + $0x20] sm:$0xf]
        %v1837 = vld [vmem:[%s1827 + $0x24] sm:$0xf]
        %v1838 = vld [vmem:[%s1827 + $0x28] sm:$0xf]
        %v1839 = vld [vmem:[%s1827 + $0x2c] sm:$0xf]
        %v1840 = vld [vmem:[%s1827 + $0x30] sm:$0xf]
        %v1841 = vld [vmem:[%s1827 + $0x34] sm:$0xf]
        %v1842 = vld [vmem:[%s1827 + $0x38] sm:$0xf]
        %v1843 = vld [vmem:[%s1827 + $0x3c] sm:$0xf]
        %s1844 = scalar_lea.vmem %s3, 7
        %v1845 = vld [vmem:[%s1844] sm:$0x1]
        %v1847 = vlaneseq
        %v1848 = vshrl.u32 %v1847, 7
        %v1849 = vsub.s32 0, %v1848
        %v1850 = vrot.slane %v1845, %v1849
        %v1868 = vunpack.c.l.b16 %v1828
        %v1869 = vunpack.c.l.b16 %v1829
        %v1870 = vunpack.c.l.b16 %v1830
        %v1871 = vunpack.c.l.b16 %v1831
        %v1872 = vunpack.c.l.b16 %v1832
        %v1873 = vunpack.c.l.b16 %v1833
        %v1874 = vunpack.c.l.b16 %v1834
        %v1875 = vunpack.c.l.b16 %v1835
        %v1876 = vunpack.c.l.b16 %v1836
        %v1877 = vunpack.c.l.b16 %v1837
        %v1878 = vunpack.c.l.b16 %v1838
        %v1879 = vunpack.c.l.b16 %v1839
        %v1880 = vunpack.c.l.b16 %v1840
        %v1881 = vunpack.c.l.b16 %v1841
        %v1882 = vunpack.c.l.b16 %v1842
        %v1883 = vunpack.c.l.b16 %v1843
        %v1884 = vpack.c.b16 %v1869, %v1868
        %v1885 = vpack.c.b16 %v1871, %v1870
        %v1886 = vpack.c.b16 %v1873, %v1872
        %v1887 = vpack.c.b16 %v1875, %v1874
        %v1888 = vpack.c.b16 %v1877, %v1876
        %v1889 = vpack.c.b16 %v1879, %v1878
        %v1890 = vpack.c.b16 %v1881, %v1880
        %v1891 = vpack.c.b16 %v1883, %v1882
        %1900 = vmatprep.subr.bf16.mxu0 0
        %1901 = vmatpush1.bf16.msra.mxu0 %v1884
        %1902 = vmatprep.subr.bf16.mxu0 0
        %1903 = vmatpush1.bf16.msra.mxu0 %v1885
        %1904 = vmatprep.subr.bf16.mxu0 0
        %1905 = vmatpush1.bf16.msra.mxu0 %v1886
        %1906 = vmatprep.subr.bf16.mxu0 0
        %1907 = vmatpush1.bf16.msra.mxu0 %v1887
        %1908 = vmatprep.subr.bf16.mxu0 0
        %1909 = vmatpush1.bf16.msra.mxu0 %v1888
        %1910 = vmatprep.subr.bf16.mxu0 0
        %1911 = vmatpush1.bf16.msra.mxu0 %v1889
        %1912 = vmatprep.subr.bf16.mxu0 0
        %1913 = vmatpush1.bf16.msra.mxu0 %v1890
        %1914 = vmatprep.subr.bf16.mxu0 0
        %1915 = vmatpush1.bf16.msra.mxu0 %v1891
        %1916 = vmatprep.subr.bf16.mxu0 0
        %1917 = vmatpush1.bf16.msra.mxu0 0
        %1918 = vmatprep.subr.bf16.mxu0 0
        %1919 = vmatpush1.bf16.msra.mxu0 0
        %1920 = vmatprep.subr.bf16.mxu0 0
        %1921 = vmatpush1.bf16.msra.mxu0 0
        %1922 = vmatprep.subr.bf16.mxu0 0
        %1923 = vmatpush1.bf16.msra.mxu0 0
        %1924 = vmatprep.subr.bf16.mxu0 0
        %1925 = vmatpush1.bf16.msra.mxu0 0
        %1926 = vmatprep.subr.bf16.mxu0 0
        %1927 = vmatpush1.bf16.msra.mxu0 0
        %1928 = vmatprep.subr.bf16.mxu0 0
        %1929 = vmatpush1.bf16.msra.mxu0 0
        %1930 = vmatprep.subr.bf16.mxu0 0
        %1931 = vmatpush1.bf16.msra.mxu0 0
        %1932 = vmatprep.mubr.bf16.mxu0 0
        %1933 = vmatmul.mubr.bf16.gmra.mrb[0].mxu0 %v1819
        %v1934 = vpop.f32.mrb[0].mxu0
        %v1935 = vadd.f32 %v1850, %v1934
        %v1936 = vpop.f32.mrb[0].mxu0
        %v1937 = vpop.f32.mrb[0].mxu0
        %v1938 = vadd.f32 %v1850, %v1937
        %v1939 = vpop.f32.mrb[0].mxu0
        %1940 = vmatprep.mubr.bf16.mxu0 0
        %1941 = vmatmul.mubr.bf16.gmra.mrb[0].mxu0 %v1820
        %v1942 = vpop.f32.mrb[0].mxu0
        %v1943 = vadd.f32 %v1850, %v1942
        %v1944 = vpop.f32.mrb[0].mxu0
        %v1945 = vpop.f32.mrb[0].mxu0
        %v1946 = vadd.f32 %v1850, %v1945
        %v1947 = vpop.f32.mrb[0].mxu0
        %1948 = vmatprep.mubr.bf16.mxu0 0
        %1949 = vmatmul.mubr.bf16.gmra.mrb[0].mxu0 %v1821
        %v1950 = vpop.f32.mrb[0].mxu0
        %v1951 = vadd.f32 %v1850, %v1950
        %v1952 = vpop.f32.mrb[0].mxu0
        %v1953 = vpop.f32.mrb[0].mxu0
        %v1954 = vadd.f32 %v1850, %v1953
        %v1955 = vpop.f32.mrb[0].mxu0
        %1956 = vmatprep.mubr.bf16.mxu0 0
        %1957 = vmatmul.mubr.bf16.gmra.mrb[0].mxu0 %v1822
        %v1958 = vpop.f32.mrb[0].mxu0
        %v1959 = vadd.f32 %v1850, %v1958
        %v1960 = vpop.f32.mrb[0].mxu0
        %v1961 = vpop.f32.mrb[0].mxu0
        %v1962 = vadd.f32 %v1850, %v1961
        %v1963 = vpop.f32.mrb[0].mxu0
        %1964 = vmatprep.mubr.bf16.mxu0 0
        %1965 = vmatmul.mubr.bf16.gmra.mrb[0].mxu0 %v1823
        %v1966 = vpop.f32.mrb[0].mxu0
        %v1967 = vadd.f32 %v1850, %v1966
        %v1968 = vpop.f32.mrb[0].mxu0
        %v1969 = vpop.f32.mrb[0].mxu0
        %v1970 = vadd.f32 %v1850, %v1969
        %v1971 = vpop.f32.mrb[0].mxu0
        %1972 = vmatprep.mubr.bf16.mxu0 0
        %1973 = vmatmul.mubr.bf16.gmra.mrb[0].mxu0 %v1824
        %v1974 = vpop.f32.mrb[0].mxu0
        %v1975 = vadd.f32 %v1850, %v1974
        %v1976 = vpop.f32.mrb[0].mxu0
        %v1977 = vpop.f32.mrb[0].mxu0
        %v1978 = vadd.f32 %v1850, %v1977
        %v1979 = vpop.f32.mrb[0].mxu0
        %1980 = vmatprep.mubr.bf16.mxu0 0
        %1981 = vmatmul.mubr.bf16.gmra.mrb[0].mxu0 %v1825
        %v1982 = vpop.f32.mrb[0].mxu0
        %v1983 = vadd.f32 %v1850, %v1982
        %v1984 = vpop.f32.mrb[0].mxu0
        %v1985 = vpop.f32.mrb[0].mxu0
        %v1986 = vadd.f32 %v1850, %v1985
        %v1987 = vpop.f32.mrb[0].mxu0
        %1988 = vmatprep.mubr.bf16.mxu0 0
        %1989 = vmatmul.mubr.bf16.gmra.mrb[0].mxu0 %v1826
        %v1990 = vpop.f32.mrb[0].mxu0
        %v1991 = vadd.f32 %v1850, %v1990
        %v1992 = vpop.f32.mrb[0].mxu0
        %v1993 = vpop.f32.mrb[0].mxu0
        %v1994 = vadd.f32 %v1850, %v1993
        %v1995 = vpop.f32.mrb[0].mxu0
        %1996 = vdwg.mxu0
        %v1997 = vpack.c.bf16 %v1938, %v1935
        %v1998 = vpack.c.bf16 %v1946, %v1943
        %v1999 = vpack.c.bf16 %v1954, %v1951
        %v2000 = vpack.c.bf16 %v1962, %v1959
        %v2001 = vpack.c.bf16 %v1970, %v1967
        %v2002 = vpack.c.bf16 %v1978, %v1975
        %v2003 = vpack.c.bf16 %v1986, %v1983
        %v2004 = vpack.c.bf16 %v1994, %v1991
        %v2013 = vunpack.c.l.b16 %v1997
        %v2014 = vunpack.c.h.b16 %v1997
        %v2015 = vunpack.c.l.b16 %v1998
        %v2016 = vunpack.c.h.b16 %v1998
        %v2017 = vunpack.c.l.b16 %v1999
        %v2018 = vunpack.c.h.b16 %v1999
        %v2019 = vunpack.c.l.b16 %v2000
        %v2020 = vunpack.c.h.b16 %v2000
        %v2021 = vunpack.c.l.b16 %v2001
        %v2022 = vunpack.c.h.b16 %v2001
        %v2023 = vunpack.c.l.b16 %v2002
        %v2024 = vunpack.c.h.b16 %v2002
        %v2025 = vunpack.c.l.b16 %v2003
        %v2026 = vunpack.c.h.b16 %v2003
        %v2027 = vunpack.c.l.b16 %v2004
        %v2028 = vunpack.c.h.b16 %v2004
        %v2029 = vpack.c.b16 %v2013, %v2013
        %v2030 = vpack.c.b16 %v2014, %v2014
        %v2031 = vpack.c.b16 %v2015, %v2015
        %v2032 = vpack.c.b16 %v2016, %v2016
        %v2033 = vpack.c.b16 %v2017, %v2017
        %v2034 = vpack.c.b16 %v2018, %v2018
        %v2035 = vpack.c.b16 %v2019, %v2019
        %v2036 = vpack.c.b16 %v2020, %v2020
        %v2037 = vpack.c.b16 %v2021, %v2021
        %v2038 = vpack.c.b16 %v2022, %v2022
        %v2039 = vpack.c.b16 %v2023, %v2023
        %v2040 = vpack.c.b16 %v2024, %v2024
        %v2041 = vpack.c.b16 %v2025, %v2025
        %v2042 = vpack.c.b16 %v2026, %v2026
        %v2043 = vpack.c.b16 %v2027, %v2027
        %v2044 = vpack.c.b16 %v2028, %v2028
        %2061 = vst [vmem:[%s206] sm:$0xf] %v2029
        %2062 = vst [vmem:[%s206 + $0x4] sm:$0xf] %v2030
        %2063 = vst [vmem:[%s206 + $0x8] sm:$0xf] %v2031
        %2064 = vst [vmem:[%s206 + $0xc] sm:$0xf] %v2032
        %2065 = vst [vmem:[%s206 + $0x10] sm:$0xf] %v2033
        %2066 = vst [vmem:[%s206 + $0x14] sm:$0xf] %v2034
        %2067 = vst [vmem:[%s206 + $0x18] sm:$0xf] %v2035
        %2068 = vst [vmem:[%s206 + $0x1c] sm:$0xf] %v2036
        %2069 = vst [vmem:[%s206 + $0x20] sm:$0xf] %v2037
        %2070 = vst [vmem:[%s206 + $0x24] sm:$0xf] %v2038
        %2071 = vst [vmem:[%s206 + $0x28] sm:$0xf] %v2039
        %2072 = vst [vmem:[%s206 + $0x2c] sm:$0xf] %v2040
        %2073 = vst [vmem:[%s206 + $0x30] sm:$0xf] %v2041
        %2074 = vst [vmem:[%s206 + $0x34] sm:$0xf] %v2042
        %2075 = vst [vmem:[%s206 + $0x38] sm:$0xf] %v2043
        %2076 = vst [vmem:[%s206 + $0x3c] sm:$0xf] %v2044
        %s2077 = sand.u32 %s116, 1
        %s2078 = scalar_lea.sflag [#allocation4], %s2077
        %s2079 = sand.u32 %s116, 1
        %s2080 = smul.addr %s2079, 64
        %s2081 = scalar_lea.vmem [#allocation5], %s2080
        // Predicated region
        $region41: #{tpu_custom_call.1} parent=35 // pred_check
          %p2082 = pneg %p126
        $region42: #{tpu_custom_call.1} parent=35 // pred_check_branch
          %2084 = sbr.rel (%p2082) target = $region44
        $region43: #{tpu_custom_call.1} parent=35 // pred_region
          %s2085 = smul.u32 16, %s19
          %s2087 = ssub.s32 1024, 1024
          %2088 = vsyncadd %s2078, %s2087
          %s2089 = smul.addr %s2085, 64
          %s2090 = scalar_lea.hbm %s4, %s2089
          %s2091 = sshll.u32 %s2081, 4
          %s2092 = int_to_ptr.vmem [resolvable:$true] %s2091
          %2097 = dma.vmem_to_hbm [thread:$0]  %s2092, 1024, %s2090, %s2078, 64, 64, 4
        $region44: #{tpu_custom_call.1} parent=35 // pred_fallthru
          _
      $region36: #{tpu_custom_call.1} parent=5 // pred_fallthru
        _
      %p2098 = scmp.le.s32.totalorder 2, %s14
      // Predicated region
      $region45: #{tpu_custom_call.1} parent=5 // pred_check
        %p2099 = pneg %p2098
      $region46: #{tpu_custom_call.1} parent=5 // pred_check_branch
        %2101 = sbr.rel (%p2099) target = $region48
      $region47: #{tpu_custom_call.1} parent=5 // pred_region
        %s2102 = ssub.s32 %s14, 2
        // Predicated region
        $region49: #{tpu_custom_call.1} parent=47 // pred_check
          %p2103 = pneg %p132
        $region50: #{tpu_custom_call.1} parent=47 // pred_check_branch
          %2105 = sbr.rel (%p2103) target = $region52
        $region51: #{tpu_custom_call.1} parent=47 // pred_region
          %s2106 = sand.u32 %s117, 1
          %s2107 = scalar_lea.sflag [#allocation4], %s2106
          %s2108 = sand.u32 %s117, 1
          %s2109 = smul.addr %s2108, 64
          %s2110 = scalar_lea.vmem [#allocation5], %s2109
          %2111 = dma.done %s2107, 1024
        $region52: #{tpu_custom_call.1} parent=47 // pred_fallthru
          _
      $region48: #{tpu_custom_call.1} parent=5 // pred_fallthru
        _
    $region6: #{tpu_custom_call.1} parent=1 // loop_footer
      %s18 = sadd.s32 1, %s14
    $region7: #{tpu_custom_call.1} parent=1 // loop_footer_branch
      %13 = sbr.rel target = $region3
    $region8: #{tpu_custom_call.1} parent=1 // loop_exit
      _
    %2112 = vsyncpa [#allocation3], 1
    %s2113 = scalar_lea.sflag [#allocation3], 1
    %2114 = vsyncpa %s2113, 1
    %2115 = vsyncpa [#allocation4], 1
    %s2116 = scalar_lea.sflag [#allocation4], 1
    %2117 = vsyncpa %s2116, 1

</llo_original>
